<compile_context>
chip_gen: v6e
topology: v6e:2x2x1
jax: 0.10.0
libtpu: 0.0.40
codegen_flags: <defaults>
</compile_context>

<pallas_src>
import functools
import math

import jax
import jax.numpy as jnp
from jax import lax
from jax.experimental import pallas as pl
from jax.experimental.pallas import tpu as pltpu


def _bert2d_attention_kernel(
    x_ref, mask_ref,
    wq_ref, bq_ref, wk_ref, bk_ref, wv_ref, bv_ref,
    wo_ref, bo_ref, gamma_ref, beta_ref,
    o_ref,
    ctx_ref,                       # VMEM scratch (S, H) f32: per-head context slab
    *, num_heads, head_dim, ln_eps,
):
    x = x_ref[0]                   # (S, H)  current batch element
    xf = x.astype(jnp.float32)

    # nn.Linear weights are (out, in): contract x's feature dim with the weight's
    # "in" dim directly on the MXU -- no transpose anywhere.
    dn = (((1,), (1,)), ((), ()))

    q = lax.dot_general(x, wq_ref[...], dn, preferred_element_type=jnp.float32) + bq_ref[...]
    k = lax.dot_general(x, wk_ref[...], dn, preferred_element_type=jnp.float32) + bk_ref[...]
    v = lax.dot_general(x, wv_ref[...], dn, preferred_element_type=jnp.float32) + bv_ref[...]

    mask = mask_ref[0]             # (1, S) additive key mask, broadcast over queries
    scale = 1.0 / math.sqrt(head_dim)

    # Per-head attention using static feature-dim slices: no in-kernel
    # reshape/transpose of the (S, H) activations is needed.
    for h in range(num_heads):
        lo = h * head_dim
        qh = q[:, lo:lo + head_dim]            # (S, dh)
        kh = k[:, lo:lo + head_dim]
        vh = v[:, lo:lo + head_dim]
        s = lax.dot_general(qh, kh, (((1,), (1,)), ((), ())),
                            preferred_element_type=jnp.float32) * scale   # (S, S)
        s = s + mask
        m = jnp.max(s, axis=-1, keepdims=True)
        p = jnp.exp(s - m)
        p = p / jnp.sum(p, axis=-1, keepdims=True)
        # TODO(synk): attention-prob dropout omitted (eval-mode no-op in the reference).
        ctx_ref[:, lo:lo + head_dim] = jnp.dot(p, vh, preferred_element_type=jnp.float32)

    ctx = ctx_ref[...]                         # (S, H) f32

    # Bert2DSelfOutput: dense + residual + LayerNorm (hidden dropout = eval no-op).
    out = lax.dot_general(ctx.astype(wo_ref.dtype), wo_ref[...], dn,
                          preferred_element_type=jnp.float32) + bo_ref[...]
    y = out + xf
    mu = jnp.mean(y, axis=-1, keepdims=True)
    var = jnp.mean(jnp.square(y - mu), axis=-1, keepdims=True)
    yn = (y - mu) * lax.rsqrt(var + ln_eps)
    yn = yn * gamma_ref[...] + beta_ref[...]
    o_ref[0] = yn.astype(o_ref.dtype)


def bert2d_attention(hidden_states, params, attention_mask=None, *, num_heads, ln_eps=1e-12):
    """hidden_states: (B, S, H); params: nn.Linear-layout weights (out,in) + LN params.

    attention_mask: optional additive mask of shape (B, S) (or reshapeable to it),
    0 for keep / large-negative for masked, added to the attention logits.
    """
    B, S, H = hidden_states.shape
    assert H % num_heads == 0
    head_dim = H // num_heads
    dtype = hidden_states.dtype

    if attention_mask is None:
        add_mask = jnp.zeros((B, 1, S), dtype=jnp.float32)
    else:
        add_mask = attention_mask.reshape(B, 1, S).astype(jnp.float32)

    row = lambda p: p.reshape(1, H)
    wq, bq = params["wq"], row(params["bq"])
    wk, bk = params["wk"], row(params["bk"])
    wv, bv = params["wv"], row(params["bv"])
    wo, bo = params["wo"], row(params["bo"])
    gamma, beta = row(params["gamma"]), row(params["beta"])

    kernel = functools.partial(
        _bert2d_attention_kernel,
        num_heads=num_heads, head_dim=head_dim, ln_eps=float(ln_eps),
    )

    weight_spec = pl.BlockSpec((H, H), lambda b: (0, 0))
    vec_spec = pl.BlockSpec((1, H), lambda b: (0, 0))

    return pl.pallas_call(
        kernel,
        out_shape=jax.ShapeDtypeStruct((B, S, H), dtype),
        grid=(B,),
        in_specs=[
            pl.BlockSpec((1, S, H), lambda b: (b, 0, 0)),   # hidden_states[b]
            pl.BlockSpec((1, 1, S), lambda b: (b, 0, 0)),   # additive mask[b]
            weight_spec, vec_spec,                           # Wq, bq
            weight_spec, vec_spec,                           # Wk, bk
            weight_spec, vec_spec,                           # Wv, bv
            weight_spec, vec_spec,                           # Wo, bo
            vec_spec, vec_spec,                              # LN gamma, beta
        ],
        out_specs=pl.BlockSpec((1, S, H), lambda b: (b, 0, 0)),
        scratch_shapes=[pltpu.VMEM((S, H), jnp.float32)],
        compiler_params=pltpu.CompilerParams(
            dimension_semantics=("parallel",),               # batch axis -> both TCs on v7x
        ),
    )(hidden_states, add_mask, wq, bq, wk, bk, wv, bv, wo, bo, gamma, beta)


def bert2d_attention_ref(hidden_states, params, attention_mask=None, *, num_heads, ln_eps=1e-12):
    B, S, H = hidden_states.shape
    dh = H // num_heads

    def lin(x, w, b):
        return x @ w.T + b

    def split(x):
        return x.reshape(B, S, num_heads, dh).transpose(0, 2, 1, 3)

    q = split(lin(hidden_states, params["wq"], params["bq"]))
    k = split(lin(hidden_states, params["wk"], params["bk"]))
    v = split(lin(hidden_states, params["wv"], params["bv"]))
    s = jnp.einsum("bhqd,bhkd->bhqk", q, k) / math.sqrt(dh)
    if attention_mask is not None:
        s = s + attention_mask.reshape(B, 1, 1, S)
    p = jax.nn.softmax(s, axis=-1)
    ctx = jnp.einsum("bhqk,bhkd->bhqd", p, v).transpose(0, 2, 1, 3).reshape(B, S, H)
    out = lin(ctx, params["wo"], params["bo"])
    y = out + hidden_states
    mu = y.mean(-1, keepdims=True)
    var = ((y - mu) ** 2).mean(-1, keepdims=True)
    return (y - mu) / jnp.sqrt(var + ln_eps) * params["gamma"] + params["beta"]


if __name__ == "__main__":
    key = jax.random.PRNGKey(0)
    B, S, H, NH = 2, 8, 32, 4       # small shapes: batch=2, seq=8, hidden=32, heads=4

    keys = jax.random.split(key, 12)
    hidden_states = jax.random.normal(keys[0], (B, S, H), dtype=jnp.float32)

    scale = 0.02
    params = {
        "wq": jax.random.normal(keys[1], (H, H), jnp.float32) * scale,
        "bq": jax.random.normal(keys[2], (H,), jnp.float32) * scale,
        "wk": jax.random.normal(keys[3], (H, H), jnp.float32) * scale,
        "bk": jax.random.normal(keys[4], (H,), jnp.float32) * scale,
        "wv": jax.random.normal(keys[5], (H, H), jnp.float32) * scale,
        "bv": jax.random.normal(keys[6], (H,), jnp.float32) * scale,
        "wo": jax.random.normal(keys[7], (H, H), jnp.float32) * scale,
        "bo": jax.random.normal(keys[8], (H,), jnp.float32) * scale,
        "gamma": 1.0 + 0.1 * jax.random.normal(keys[9], (H,), jnp.float32),
        "beta": 0.1 * jax.random.normal(keys[10], (H,), jnp.float32),
    }

    # Padding-style additive attention mask: last two key positions of batch 1 masked out.
    pad = jnp.ones((B, S), dtype=jnp.float32).at[1, -2:].set(0.0)
    add_mask = (1.0 - pad) * (-1e9)

    out = bert2d_attention(hidden_states, params, add_mask, num_heads=NH)
    out = jax.block_until_ready(out)

    ref = bert2d_attention_ref(hidden_states, params, add_mask, num_heads=NH)
    assert out.shape == (B, S, H)
    assert jnp.allclose(out, ref, atol=1e-4, rtol=1e-4), "mismatch vs reference"

    print("KERNEL_OK")
</pallas_src>

<mosaic_0001>
module attributes {stable_mosaic.version = 11 : i64} {
  func.func @_bert2d_attention_kernel(%arg0: i32, %arg1: memref<1x8x32xf32, #tpu.memory_space<vmem>>, %arg2: memref<1x1x8xf32, #tpu.memory_space<vmem>>, %arg3: memref<32x32xf32, #tpu.memory_space<vmem>>, %arg4: memref<1x32xf32, #tpu.memory_space<vmem>>, %arg5: memref<32x32xf32, #tpu.memory_space<vmem>>, %arg6: memref<1x32xf32, #tpu.memory_space<vmem>>, %arg7: memref<32x32xf32, #tpu.memory_space<vmem>>, %arg8: memref<1x32xf32, #tpu.memory_space<vmem>>, %arg9: memref<32x32xf32, #tpu.memory_space<vmem>>, %arg10: memref<1x32xf32, #tpu.memory_space<vmem>>, %arg11: memref<1x32xf32, #tpu.memory_space<vmem>>, %arg12: memref<1x32xf32, #tpu.memory_space<vmem>>, %arg13: memref<1x8x32xf32, #tpu.memory_space<vmem>>, %arg14: memref<8x32xf32, #tpu.memory_space<vmem>>) attributes {dimension_semantics = [#tpu.dimension_semantics<parallel>], iteration_bounds = array<i64: 2>, scalar_prefetch = 0 : i64, scratch_operands = 1 : i64, tpu.core_type = #tpu.core_type<tc>, window_params = [{transform_indices = @transform_0, window_bounds = array<i64: 1, 8, 32>}, {transform_indices = @transform_1, window_bounds = array<i64: 1, 1, 8>}, {pipeline_mode = #tpu.pipeline_mode<synchronous>, transform_indices = @transform_2, window_bounds = array<i64: 32, 32>}, {pipeline_mode = #tpu.pipeline_mode<synchronous>, transform_indices = @transform_3, window_bounds = array<i64: 1, 32>}, {pipeline_mode = #tpu.pipeline_mode<synchronous>, transform_indices = @transform_4, window_bounds = array<i64: 32, 32>}, {pipeline_mode = #tpu.pipeline_mode<synchronous>, transform_indices = @transform_5, window_bounds = array<i64: 1, 32>}, {pipeline_mode = #tpu.pipeline_mode<synchronous>, transform_indices = @transform_6, window_bounds = array<i64: 32, 32>}, {pipeline_mode = #tpu.pipeline_mode<synchronous>, transform_indices = @transform_7, window_bounds = array<i64: 1, 32>}, {pipeline_mode = #tpu.pipeline_mode<synchronous>, transform_indices = @transform_8, window_bounds = array<i64: 32, 32>}, {pipeline_mode = #tpu.pipeline_mode<synchronous>, transform_indices = @transform_9, window_bounds = array<i64: 1, 32>}, {pipeline_mode = #tpu.pipeline_mode<synchronous>, transform_indices = @transform_10, window_bounds = array<i64: 1, 32>}, {pipeline_mode = #tpu.pipeline_mode<synchronous>, transform_indices = @transform_11, window_bounds = array<i64: 1, 32>}, {transform_indices = @transform_12, window_bounds = array<i64: 1, 8, 32>}]} {
    %c0 = arith.constant 0 : index
    %c0_0 = arith.constant 0 : index
    %c0_1 = arith.constant 0 : index
    %0 = vector.load %arg1[%c0, %c0_0, %c0_1] : memref<1x8x32xf32, #tpu.memory_space<vmem>>, vector<1x8x32xf32>
    %1 = vector.shape_cast %0 : vector<1x8x32xf32> to vector<8x32xf32>
    %c0_2 = arith.constant 0 : index
    %c0_3 = arith.constant 0 : index
    %2 = vector.load %arg3[%c0_2, %c0_3] : memref<32x32xf32, #tpu.memory_space<vmem>>, vector<32x32xf32>
    %cst = arith.constant dense<0.000000e+00> : vector<8x32xf32>
    %3 = tpu.matmul %1, %2, %cst {dimension_numbers = #tpu.dot_dimension_numbers<[1], [1], [0], [0], [0, 0, 1, 0], [], []>} : vector<8x32xf32>, vector<32x32xf32>, vector<8x32xf32> -> vector<8x32xf32>
    %c0_4 = arith.constant 0 : index
    %c0_5 = arith.constant 0 : index
    %4 = vector.load %arg4[%c0_4, %c0_5] : memref<1x32xf32, #tpu.memory_space<vmem>>, vector<1x32xf32>
    %5 = vector.broadcast %4 : vector<1x32xf32> to vector<8x32xf32>
    %6 = arith.addf %3, %5 : vector<8x32xf32>
    %c0_6 = arith.constant 0 : index
    %c0_7 = arith.constant 0 : index
    %7 = vector.load %arg5[%c0_6, %c0_7] : memref<32x32xf32, #tpu.memory_space<vmem>>, vector<32x32xf32>
    %cst_8 = arith.constant dense<0.000000e+00> : vector<8x32xf32>
    %8 = tpu.matmul %1, %7, %cst_8 {dimension_numbers = #tpu.dot_dimension_numbers<[1], [1], [0], [0], [0, 0, 1, 0], [], []>} : vector<8x32xf32>, vector<32x32xf32>, vector<8x32xf32> -> vector<8x32xf32>
    %c0_9 = arith.constant 0 : index
    %c0_10 = arith.constant 0 : index
    %9 = vector.load %arg6[%c0_9, %c0_10] : memref<1x32xf32, #tpu.memory_space<vmem>>, vector<1x32xf32>
    %10 = vector.broadcast %9 : vector<1x32xf32> to vector<8x32xf32>
    %11 = arith.addf %8, %10 : vector<8x32xf32>
    %c0_11 = arith.constant 0 : index
    %c0_12 = arith.constant 0 : index
    %12 = vector.load %arg7[%c0_11, %c0_12] : memref<32x32xf32, #tpu.memory_space<vmem>>, vector<32x32xf32>
    %cst_13 = arith.constant dense<0.000000e+00> : vector<8x32xf32>
    %13 = tpu.matmul %1, %12, %cst_13 {dimension_numbers = #tpu.dot_dimension_numbers<[1], [1], [0], [0], [0, 0, 1, 0], [], []>} : vector<8x32xf32>, vector<32x32xf32>, vector<8x32xf32> -> vector<8x32xf32>
    %c0_14 = arith.constant 0 : index
    %c0_15 = arith.constant 0 : index
    %14 = vector.load %arg8[%c0_14, %c0_15] : memref<1x32xf32, #tpu.memory_space<vmem>>, vector<1x32xf32>
    %15 = vector.broadcast %14 : vector<1x32xf32> to vector<8x32xf32>
    %16 = arith.addf %13, %15 : vector<8x32xf32>
    %c0_16 = arith.constant 0 : index
    %c0_17 = arith.constant 0 : index
    %c0_18 = arith.constant 0 : index
    %17 = vector.load %arg2[%c0_16, %c0_17, %c0_18] : memref<1x1x8xf32, #tpu.memory_space<vmem>>, vector<1x1x8xf32>
    %18 = vector.shape_cast %17 : vector<1x1x8xf32> to vector<1x8xf32>
    %19 = vector.extract_strided_slice %6 {offsets = [0, 0], sizes = [8, 8], strides = [1, 1]} : vector<8x32xf32> to vector<8x8xf32>
    %20 = vector.extract_strided_slice %11 {offsets = [0, 0], sizes = [8, 8], strides = [1, 1]} : vector<8x32xf32> to vector<8x8xf32>
    %21 = vector.extract_strided_slice %16 {offsets = [0, 0], sizes = [8, 8], strides = [1, 1]} : vector<8x32xf32> to vector<8x8xf32>
    %cst_19 = arith.constant dense<0.000000e+00> : vector<8x8xf32>
    %22 = tpu.matmul %19, %20, %cst_19 {dimension_numbers = #tpu.dot_dimension_numbers<[1], [1], [0], [0], [0, 0, 1, 0], [], []>} : vector<8x8xf32>, vector<8x8xf32>, vector<8x8xf32> -> vector<8x8xf32>
    %cst_20 = arith.constant 0.353553385 : f32
    %23 = vector.broadcast %cst_20 : f32 to vector<8x8xf32>
    %24 = arith.mulf %22, %23 : vector<8x8xf32>
    %25 = vector.broadcast %18 : vector<1x8xf32> to vector<8x8xf32>
    %26 = arith.addf %24, %25 : vector<8x8xf32>
    %cst_21 = arith.constant dense<0xFF800000> : vector<8xf32>
    %27 = vector.multi_reduction <maximumf>, %26, %cst_21 [1] : vector<8x8xf32> to vector<8xf32>
    %28 = vector.shape_cast %27 : vector<8xf32> to vector<8x1xf32>
    %29 = vector.broadcast %28 : vector<8x1xf32> to vector<8x8xf32>
    %30 = arith.subf %26, %29 : vector<8x8xf32>
    %31 = math.exp %30 : vector<8x8xf32>
    %cst_22 = arith.constant dense<0.000000e+00> : vector<8xf32>
    %32 = vector.multi_reduction <add>, %31, %cst_22 [1] : vector<8x8xf32> to vector<8xf32>
    %33 = vector.shape_cast %32 : vector<8xf32> to vector<8x1xf32>
    %34 = vector.broadcast %33 : vector<8x1xf32> to vector<8x8xf32>
    %35 = arith.divf %31, %34 : vector<8x8xf32>
    %cst_23 = arith.constant dense<0.000000e+00> : vector<8x8xf32>
    %36 = tpu.matmul %35, %21, %cst_23 {dimension_numbers = #tpu.dot_dimension_numbers<[1], [0], [0], [1], [0, 0, 1, 1], [], []>} : vector<8x8xf32>, vector<8x8xf32>, vector<8x8xf32> -> vector<8x8xf32>
    %c0_24 = arith.constant 0 : index
    %c0_25 = arith.constant 0 : index
    %37 = vector.load %arg14[%c0_24, %c0_25] : memref<8x32xf32, #tpu.memory_space<vmem>>, vector<8x8xf32>
    tpu.vector_store %arg14[%c0_24, %c0_25], %36 {strides = array<i32>} : memref<8x32xf32, #tpu.memory_space<vmem>>, vector<8x8xf32>,
    %38 = vector.extract_strided_slice %6 {offsets = [0, 8], sizes = [8, 8], strides = [1, 1]} : vector<8x32xf32> to vector<8x8xf32>
    %39 = vector.extract_strided_slice %11 {offsets = [0, 8], sizes = [8, 8], strides = [1, 1]} : vector<8x32xf32> to vector<8x8xf32>
    %40 = vector.extract_strided_slice %16 {offsets = [0, 8], sizes = [8, 8], strides = [1, 1]} : vector<8x32xf32> to vector<8x8xf32>
    %cst_26 = arith.constant dense<0.000000e+00> : vector<8x8xf32>
    %41 = tpu.matmul %38, %39, %cst_26 {dimension_numbers = #tpu.dot_dimension_numbers<[1], [1], [0], [0], [0, 0, 1, 0], [], []>} : vector<8x8xf32>, vector<8x8xf32>, vector<8x8xf32> -> vector<8x8xf32>
    %cst_27 = arith.constant 0.353553385 : f32
    %42 = vector.broadcast %cst_27 : f32 to vector<8x8xf32>
    %43 = arith.mulf %41, %42 : vector<8x8xf32>
    %44 = vector.broadcast %18 : vector<1x8xf32> to vector<8x8xf32>
    %45 = arith.addf %43, %44 : vector<8x8xf32>
    %cst_28 = arith.constant dense<0xFF800000> : vector<8xf32>
    %46 = vector.multi_reduction <maximumf>, %45, %cst_28 [1] : vector<8x8xf32> to vector<8xf32>
    %47 = vector.shape_cast %46 : vector<8xf32> to vector<8x1xf32>
    %48 = vector.broadcast %47 : vector<8x1xf32> to vector<8x8xf32>
    %49 = arith.subf %45, %48 : vector<8x8xf32>
    %50 = math.exp %49 : vector<8x8xf32>
    %cst_29 = arith.constant dense<0.000000e+00> : vector<8xf32>
    %51 = vector.multi_reduction <add>, %50, %cst_29 [1] : vector<8x8xf32> to vector<8xf32>
    %52 = vector.shape_cast %51 : vector<8xf32> to vector<8x1xf32>
    %53 = vector.broadcast %52 : vector<8x1xf32> to vector<8x8xf32>
    %54 = arith.divf %50, %53 : vector<8x8xf32>
    %cst_30 = arith.constant dense<0.000000e+00> : vector<8x8xf32>
    %55 = tpu.matmul %54, %40, %cst_30 {dimension_numbers = #tpu.dot_dimension_numbers<[1], [0], [0], [1], [0, 0, 1, 1], [], []>} : vector<8x8xf32>, vector<8x8xf32>, vector<8x8xf32> -> vector<8x8xf32>
    %c0_31 = arith.constant 0 : index
    %c8 = arith.constant 8 : index
    %56 = vector.load %arg14[%c0_31, %c8] : memref<8x32xf32, #tpu.memory_space<vmem>>, vector<8x8xf32>
    tpu.vector_store %arg14[%c0_31, %c8], %55 {strides = array<i32>} : memref<8x32xf32, #tpu.memory_space<vmem>>, vector<8x8xf32>,
    %57 = vector.extract_strided_slice %6 {offsets = [0, 16], sizes = [8, 8], strides = [1, 1]} : vector<8x32xf32> to vector<8x8xf32>
    %58 = vector.extract_strided_slice %11 {offsets = [0, 16], sizes = [8, 8], strides = [1, 1]} : vector<8x32xf32> to vector<8x8xf32>
    %59 = vector.extract_strided_slice %16 {offsets = [0, 16], sizes = [8, 8], strides = [1, 1]} : vector<8x32xf32> to vector<8x8xf32>
    %cst_32 = arith.constant dense<0.000000e+00> : vector<8x8xf32>
    %60 = tpu.matmul %57, %58, %cst_32 {dimension_numbers = #tpu.dot_dimension_numbers<[1], [1], [0], [0], [0, 0, 1, 0], [], []>} : vector<8x8xf32>, vector<8x8xf32>, vector<8x8xf32> -> vector<8x8xf32>
    %cst_33 = arith.constant 0.353553385 : f32
    %61 = vector.broadcast %cst_33 : f32 to vector<8x8xf32>
    %62 = arith.mulf %60, %61 : vector<8x8xf32>
    %63 = vector.broadcast %18 : vector<1x8xf32> to vector<8x8xf32>
    %64 = arith.addf %62, %63 : vector<8x8xf32>
    %cst_34 = arith.constant dense<0xFF800000> : vector<8xf32>
    %65 = vector.multi_reduction <maximumf>, %64, %cst_34 [1] : vector<8x8xf32> to vector<8xf32>
    %66 = vector.shape_cast %65 : vector<8xf32> to vector<8x1xf32>
    %67 = vector.broadcast %66 : vector<8x1xf32> to vector<8x8xf32>
    %68 = arith.subf %64, %67 : vector<8x8xf32>
    %69 = math.exp %68 : vector<8x8xf32>
    %cst_35 = arith.constant dense<0.000000e+00> : vector<8xf32>
    %70 = vector.multi_reduction <add>, %69, %cst_35 [1] : vector<8x8xf32> to vector<8xf32>
    %71 = vector.shape_cast %70 : vector<8xf32> to vector<8x1xf32>
    %72 = vector.broadcast %71 : vector<8x1xf32> to vector<8x8xf32>
    %73 = arith.divf %69, %72 : vector<8x8xf32>
    %cst_36 = arith.constant dense<0.000000e+00> : vector<8x8xf32>
    %74 = tpu.matmul %73, %59, %cst_36 {dimension_numbers = #tpu.dot_dimension_numbers<[1], [0], [0], [1], [0, 0, 1, 1], [], []>} : vector<8x8xf32>, vector<8x8xf32>, vector<8x8xf32> -> vector<8x8xf32>
    %c0_37 = arith.constant 0 : index
    %c16 = arith.constant 16 : index
    %75 = vector.load %arg14[%c0_37, %c16] : memref<8x32xf32, #tpu.memory_space<vmem>>, vector<8x8xf32>
    tpu.vector_store %arg14[%c0_37, %c16], %74 {strides = array<i32>} : memref<8x32xf32, #tpu.memory_space<vmem>>, vector<8x8xf32>,
    %76 = vector.extract_strided_slice %6 {offsets = [0, 24], sizes = [8, 8], strides = [1, 1]} : vector<8x32xf32> to vector<8x8xf32>
    %77 = vector.extract_strided_slice %11 {offsets = [0, 24], sizes = [8, 8], strides = [1, 1]} : vector<8x32xf32> to vector<8x8xf32>
    %78 = vector.extract_strided_slice %16 {offsets = [0, 24], sizes = [8, 8], strides = [1, 1]} : vector<8x32xf32> to vector<8x8xf32>
    %cst_38 = arith.constant dense<0.000000e+00> : vector<8x8xf32>
    %79 = tpu.matmul %76, %77, %cst_38 {dimension_numbers = #tpu.dot_dimension_numbers<[1], [1], [0], [0], [0, 0, 1, 0], [], []>} : vector<8x8xf32>, vector<8x8xf32>, vector<8x8xf32> -> vector<8x8xf32>
    %cst_39 = arith.constant 0.353553385 : f32
    %80 = vector.broadcast %cst_39 : f32 to vector<8x8xf32>
    %81 = arith.mulf %79, %80 : vector<8x8xf32>
    %82 = vector.broadcast %18 : vector<1x8xf32> to vector<8x8xf32>
    %83 = arith.addf %81, %82 : vector<8x8xf32>
    %cst_40 = arith.constant dense<0xFF800000> : vector<8xf32>
    %84 = vector.multi_reduction <maximumf>, %83, %cst_40 [1] : vector<8x8xf32> to vector<8xf32>
    %85 = vector.shape_cast %84 : vector<8xf32> to vector<8x1xf32>
    %86 = vector.broadcast %85 : vector<8x1xf32> to vector<8x8xf32>
    %87 = arith.subf %83, %86 : vector<8x8xf32>
    %88 = math.exp %87 : vector<8x8xf32>
    %cst_41 = arith.constant dense<0.000000e+00> : vector<8xf32>
    %89 = vector.multi_reduction <add>, %88, %cst_41 [1] : vector<8x8xf32> to vector<8xf32>
    %90 = vector.shape_cast %89 : vector<8xf32> to vector<8x1xf32>
    %91 = vector.broadcast %90 : vector<8x1xf32> to vector<8x8xf32>
    %92 = arith.divf %88, %91 : vector<8x8xf32>
    %cst_42 = arith.constant dense<0.000000e+00> : vector<8x8xf32>
    %93 = tpu.matmul %92, %78, %cst_42 {dimension_numbers = #tpu.dot_dimension_numbers<[1], [0], [0], [1], [0, 0, 1, 1], [], []>} : vector<8x8xf32>, vector<8x8xf32>, vector<8x8xf32> -> vector<8x8xf32>
    %c0_43 = arith.constant 0 : index
    %c24 = arith.constant 24 : index
    %94 = vector.load %arg14[%c0_43, %c24] : memref<8x32xf32, #tpu.memory_space<vmem>>, vector<8x8xf32>
    tpu.vector_store %arg14[%c0_43, %c24], %93 {strides = array<i32>} : memref<8x32xf32, #tpu.memory_space<vmem>>, vector<8x8xf32>,
    %c0_44 = arith.constant 0 : index
    %c0_45 = arith.constant 0 : index
    %95 = vector.load %arg14[%c0_44, %c0_45] : memref<8x32xf32, #tpu.memory_space<vmem>>, vector<8x32xf32>
    %c0_46 = arith.constant 0 : index
    %c0_47 = arith.constant 0 : index
    %96 = vector.load %arg9[%c0_46, %c0_47] : memref<32x32xf32, #tpu.memory_space<vmem>>, vector<32x32xf32>
    %cst_48 = arith.constant dense<0.000000e+00> : vector<8x32xf32>
    %97 = tpu.matmul %95, %96, %cst_48 {dimension_numbers = #tpu.dot_dimension_numbers<[1], [1], [0], [0], [0, 0, 1, 0], [], []>} : vector<8x32xf32>, vector<32x32xf32>, vector<8x32xf32> -> vector<8x32xf32>
    %c0_49 = arith.constant 0 : index
    %c0_50 = arith.constant 0 : index
    %98 = vector.load %arg10[%c0_49, %c0_50] : memref<1x32xf32, #tpu.memory_space<vmem>>, vector<1x32xf32>
    %99 = vector.broadcast %98 : vector<1x32xf32> to vector<8x32xf32>
    %100 = arith.addf %97, %99 : vector<8x32xf32>
    %101 = arith.addf %100, %1 : vector<8x32xf32>
    %cst_51 = arith.constant dense<0.000000e+00> : vector<8xf32>
    %102 = vector.multi_reduction <add>, %101, %cst_51 [1] : vector<8x32xf32> to vector<8xf32>
    %103 = vector.shape_cast %102 : vector<8xf32> to vector<8x1xf32>
    %cst_52 = arith.constant 3.200000e+01 : f32
    %104 = vector.broadcast %cst_52 : f32 to vector<8x1xf32>
    %105 = arith.divf %103, %104 : vector<8x1xf32>
    %106 = vector.broadcast %105 : vector<8x1xf32> to vector<8x32xf32>
    %107 = arith.subf %101, %106 : vector<8x32xf32>
    %108 = arith.mulf %107, %107 : vector<8x32xf32>
    %cst_53 = arith.constant dense<0.000000e+00> : vector<8xf32>
    %109 = vector.multi_reduction <add>, %108, %cst_53 [1] : vector<8x32xf32> to vector<8xf32>
    %110 = vector.shape_cast %109 : vector<8xf32> to vector<8x1xf32>
    %cst_54 = arith.constant 3.200000e+01 : f32
    %111 = vector.broadcast %cst_54 : f32 to vector<8x1xf32>
    %112 = arith.divf %110, %111 : vector<8x1xf32>
    %113 = vector.broadcast %105 : vector<8x1xf32> to vector<8x32xf32>
    %114 = arith.subf %101, %113 : vector<8x32xf32>
    %cst_55 = arith.constant 9.99999996E-13 : f32
    %115 = vector.broadcast %cst_55 : f32 to vector<8x1xf32>
    %116 = arith.addf %112, %115 : vector<8x1xf32>
    %117 = math.rsqrt %116 : vector<8x1xf32>
    %118 = vector.broadcast %117 : vector<8x1xf32> to vector<8x32xf32>
    %119 = arith.mulf %114, %118 : vector<8x32xf32>
    %c0_56 = arith.constant 0 : index
    %c0_57 = arith.constant 0 : index
    %120 = vector.load %arg11[%c0_56, %c0_57] : memref<1x32xf32, #tpu.memory_space<vmem>>, vector<1x32xf32>
    %121 = vector.broadcast %120 : vector<1x32xf32> to vector<8x32xf32>
    %122 = arith.mulf %119, %121 : vector<8x32xf32>
    %c0_58 = arith.constant 0 : index
    %c0_59 = arith.constant 0 : index
    %123 = vector.load %arg12[%c0_58, %c0_59] : memref<1x32xf32, #tpu.memory_space<vmem>>, vector<1x32xf32>
    %124 = vector.broadcast %123 : vector<1x32xf32> to vector<8x32xf32>
    %125 = arith.addf %122, %124 : vector<8x32xf32>
    %c0_60 = arith.constant 0 : index
    %c0_61 = arith.constant 0 : index
    %c0_62 = arith.constant 0 : index
    %126 = vector.load %arg13[%c0_60, %c0_61, %c0_62] : memref<1x8x32xf32, #tpu.memory_space<vmem>>, vector<1x8x32xf32>
    %127 = vector.shape_cast %126 : vector<1x8x32xf32> to vector<8x32xf32>
    %128 = vector.shape_cast %125 : vector<8x32xf32> to vector<1x8x32xf32>
    tpu.vector_store %arg13[%c0_60, %c0_61, %c0_62], %128 {strides = array<i32>} : memref<1x8x32xf32, #tpu.memory_space<vmem>>, vector<1x8x32xf32>,
    return
  }
  func.func @transform_0(%arg0: i32) -> (i32, i32, i32) {
    %c0_i32 = arith.constant 0 : i32
    %c0_i32_0 = arith.constant 0 : i32
    %c0_i32_1 = arith.constant 0 : i32
    return %arg0, %c0_i32, %c0_i32_0 : i32, i32, i32
  }
  func.func @transform_1(%arg0: i32) -> (i32, i32, i32) {
    %c0_i32 = arith.constant 0 : i32
    %c0_i32_0 = arith.constant 0 : i32
    %c0_i32_1 = arith.constant 0 : i32
    return %arg0, %c0_i32, %c0_i32_0 : i32, i32, i32
  }
  func.func @transform_2(%arg0: i32) -> (i32, i32) {
    %c0_i32 = arith.constant 0 : i32
    %c0_i32_0 = arith.constant 0 : i32
    %c0_i32_1 = arith.constant 0 : i32
    return %c0_i32, %c0_i32_0 : i32, i32
  }
  func.func @transform_3(%arg0: i32) -> (i32, i32) {
    %c0_i32 = arith.constant 0 : i32
    %c0_i32_0 = arith.constant 0 : i32
    %c0_i32_1 = arith.constant 0 : i32
    return %c0_i32, %c0_i32_0 : i32, i32
  }
  func.func @transform_4(%arg0: i32) -> (i32, i32) {
    %c0_i32 = arith.constant 0 : i32
    %c0_i32_0 = arith.constant 0 : i32
    %c0_i32_1 = arith.constant 0 : i32
    return %c0_i32, %c0_i32_0 : i32, i32
  }
  func.func @transform_5(%arg0: i32) -> (i32, i32) {
    %c0_i32 = arith.constant 0 : i32
    %c0_i32_0 = arith.constant 0 : i32
    %c0_i32_1 = arith.constant 0 : i32
    return %c0_i32, %c0_i32_0 : i32, i32
  }
  func.func @transform_6(%arg0: i32) -> (i32, i32) {
    %c0_i32 = arith.constant 0 : i32
    %c0_i32_0 = arith.constant 0 : i32
    %c0_i32_1 = arith.constant 0 : i32
    return %c0_i32, %c0_i32_0 : i32, i32
  }
  func.func @transform_7(%arg0: i32) -> (i32, i32) {
    %c0_i32 = arith.constant 0 : i32
    %c0_i32_0 = arith.constant 0 : i32
    %c0_i32_1 = arith.constant 0 : i32
    return %c0_i32, %c0_i32_0 : i32, i32
  }
  func.func @transform_8(%arg0: i32) -> (i32, i32) {
    %c0_i32 = arith.constant 0 : i32
    %c0_i32_0 = arith.constant 0 : i32
    %c0_i32_1 = arith.constant 0 : i32
    return %c0_i32, %c0_i32_0 : i32, i32
  }
  func.func @transform_9(%arg0: i32) -> (i32, i32) {
    %c0_i32 = arith.constant 0 : i32
    %c0_i32_0 = arith.constant 0 : i32
    %c0_i32_1 = arith.constant 0 : i32
    return %c0_i32, %c0_i32_0 : i32, i32
  }
  func.func @transform_10(%arg0: i32) -> (i32, i32) {
    %c0_i32 = arith.constant 0 : i32
    %c0_i32_0 = arith.constant 0 : i32
    %c0_i32_1 = arith.constant 0 : i32
    return %c0_i32, %c0_i32_0 : i32, i32
  }
  func.func @transform_11(%arg0: i32) -> (i32, i32) {
    %c0_i32 = arith.constant 0 : i32
    %c0_i32_0 = arith.constant 0 : i32
    %c0_i32_1 = arith.constant 0 : i32
    return %c0_i32, %c0_i32_0 : i32, i32
  }
  func.func @transform_12(%arg0: i32) -> (i32, i32, i32) {
    %c0_i32 = arith.constant 0 : i32
    %c0_i32_0 = arith.constant 0 : i32
    %c0_i32_1 = arith.constant 0 : i32
    return %arg0, %c0_i32, %c0_i32_0 : i32, i32, i32
  }
}

</mosaic_0001>

<llo_original>
// kernel: tpu_custom_call.1
$region0: #{tpu_custom_call.1}
  #allocation0 [shape = 'u32[]', space=smem, size = 0x4, offset = 0x4, fixed_abs, tag = 'smem constant byte address 0x4 - core index']
  #allocation1 [shape = 'u32[144,128]{1,0:T(1,128)}', space=vmem, size = 0x12000, scoped, tag = 'internal scratch']
  #allocation2 [shape = 'f32[8,32]{1,0:T(8,128)}', space=vmem, size = 0x1000, scoped, tag = 'scratch operand']
  %s0 = inlined_call_operand.hbm [shape: f32[2,8,32], index: 0, kind: input, shape index: {}]
  %s1 = inlined_call_operand.hbm [shape: f32[2,1,8], index: 1, kind: input, shape index: {}]
  %s2 = inlined_call_operand.hbm [shape: f32[32,32], index: 2, kind: input, shape index: {}]
  %s3 = inlined_call_operand.vmem [shape: f32[1,32], index: 3, kind: input, shape index: {}]
  %s4 = inlined_call_operand.hbm [shape: f32[32,32], index: 4, kind: input, shape index: {}]
  %s5 = inlined_call_operand.vmem [shape: f32[1,32], index: 5, kind: input, shape index: {}]
  %s6 = inlined_call_operand.hbm [shape: f32[32,32], index: 6, kind: input, shape index: {}]
  %s7 = inlined_call_operand.vmem [shape: f32[1,32], index: 7, kind: input, shape index: {}]
  %s8 = inlined_call_operand.hbm [shape: f32[32,32], index: 8, kind: input, shape index: {}]
  %s9 = inlined_call_operand.vmem [shape: f32[1,32], index: 9, kind: input, shape index: {}]
  %s10 = inlined_call_operand.vmem [shape: f32[1,32], index: 10, kind: input, shape index: {}]
  %s11 = inlined_call_operand.vmem [shape: f32[1,32], index: 11, kind: input, shape index: {}]
  %s12 = inlined_call_operand.hbm [shape: f32[2,8,32], index: 12, kind: output, shape index: {}]
  %s13 = sld [smem:[#allocation0]]
  $region105: #{tpu_custom_call.1} parent=0
    _
  %s15 = ssub.s32 1, %s13
  %s16 = scalar_select 0, %s15, %s13
  $region1: #{tpu_custom_call.1} parent=0
    #allocation3 [shape = 'u8[8192]{0}', space=vmem, size = 0x2000, scoped, tag = 'input window, operand 0']
    #allocation4 [shape = 's32[2]{0}', space=sflag, size = 0x8, scoped, tag = 'scoped memory for tpu_custom_call.1']
    #allocation5 [shape = 's32[2]{0}', space=sflag, size = 0x8, scoped, tag = 'scoped memory for tpu_custom_call.1']
    #allocation6 [shape = 'u8[1024]{0}', space=vmem, size = 0x400, scoped, tag = 'input window, operand 1']
    #allocation7 [shape = 's32[2]{0}', space=sflag, size = 0x8, scoped, tag = 'scoped memory for tpu_custom_call.1']
    #allocation8 [shape = 'u8[16384]{0}', space=vmem, size = 0x4000, scoped, tag = 'input window, operand 2, single buffered']
    #allocation9 [shape = 'u8[16384]{0}', space=vmem, size = 0x4000, scoped, tag = 'input window, operand 4, single buffered']
    #allocation10 [shape = 's32[1]{0}', space=sflag, size = 0x4, scoped, tag = 'scoped memory for tpu_custom_call.1']
    #allocation11 [shape = 'u8[16384]{0}', space=vmem, size = 0x4000, scoped, tag = 'input window, operand 6, single buffered']
    #allocation12 [shape = 'u8[16384]{0}', space=vmem, size = 0x4000, scoped, tag = 'input window, operand 8, single buffered']
    #allocation13 [shape = 's32[1]{0}', space=sflag, size = 0x4, scoped, tag = 'scoped memory for tpu_custom_call.1']
    #allocation14 [shape = 'u8[8192]{0}', space=vmem, size = 0x2000, scoped, tag = 'output window, operand 0']
    %17 = vsyncpa [#allocation4], 0
    %s18 = scalar_lea.sflag [#allocation4], 1
    %19 = vsyncpa %s18, 0
    %20 = vsyncpa [#allocation7], 0
    %s21 = scalar_lea.sflag [#allocation7], 1
    %22 = vsyncpa %s21, 0
    %23 = vsyncpa [#allocation10], 0
    %24 = vsyncpa [#allocation13], 0
    %25 = vsyncpa [#allocation5], 0
    %s26 = scalar_lea.sflag [#allocation5], 1
    %27 = vsyncpa %s26, 0
    loop: start=0, step=1, limit=4
    $region2: #{tpu_custom_call.1} parent=1 // loop_pre_header
      _
    $region3: #{tpu_custom_call.1} parent=1 // loop_header
      %s29 = sphi 0, %s33
      %p30 = scmp.ge.s32.totalorder %s29, 4
      %s39 = sphi 0, %s41
      %s42 = sphi 0, %s39
      %s43 = sphi 0, %s42
      %s59 = sphi 0, %s43
      %s65 = sphi 0, %s67
      %s68 = sphi 0, %s65
      %s69 = sphi 0, %s68
      %s85 = sphi 0, %s69
      %s89 = sphi 0, %s89
      %s91 = sphi 0, %s89
      %s92 = sphi 0, %s91
      %s106 = sphi 0, %s92
      %s110 = sphi 0, %s110
      %s112 = sphi 0, %s110
      %s113 = sphi 0, %s112
      %s127 = sphi 0, %s113
      %s131 = sphi 0, %s131
      %s133 = sphi 0, %s131
      %s134 = sphi 0, %s133
      %s148 = sphi 0, %s134
      %s152 = sphi 0, %s152
      %s154 = sphi 0, %s152
      %s155 = sphi 0, %s154
      %s169 = sphi 0, %s155
      %s173 = sphi 0, %s173
      %s175 = sphi 0, %s173
      %s176 = sphi 0, %s175
      %s190 = sphi 0, %s176
      %s194 = sphi 0, %s194
      %s196 = sphi 0, %s194
      %s197 = sphi 0, %s196
      %s211 = sphi 0, %s197
      %s215 = sphi 0, %s215
      %s217 = sphi 0, %s215
      %s218 = sphi 0, %s217
      %s232 = sphi 0, %s218
      %s236 = sphi 0, %s236
      %s238 = sphi 0, %s236
      %s239 = sphi 0, %s238
      %s253 = sphi 0, %s239
      %s257 = sphi 0, %s257
      %s259 = sphi 0, %s257
      %s260 = sphi 0, %s259
      %s274 = sphi 0, %s260
      %s278 = sphi 0, %s278
      %s280 = sphi 0, %s278
      %s281 = sphi 0, %s280
      %s295 = sphi 0, %s281
      %s301 = sphi 0, %s303
      %s304 = sphi 0, %s301
      %s305 = sphi 0, %s304
      %s321 = sphi 0, %s305
    $region4: #{tpu_custom_call.1} parent=1 // loop_header_branch
      %32 = sbr.rel (%p30) target = $region8
    $region5: #{tpu_custom_call.1} parent=1 // loop_body
      %s34 = ssub.s32 %s29, 1
      %s35 = ssub.s32 %s29, 2
      %s36 = sadd.s32 %s29, 1
      %s37 = ssub.s32 %s29, %s36
      %p38 = scmp.eq.s32.totalorder %s37, 0
      %s40 = sadd.s32 %s39, 1
      %s41 = scalar_select %p38, %s39, %s40
      %p44 = pneg %p38
      %p45 = scmp.eq.s32.totalorder %s29, 1
      %p46 = por %p44, %p45
      %p47 = scmp.ne.s32.totalorder %s39, %s42
      %p48 = scmp.eq.s32.totalorder %s29, 0
      %p49 = por %p47, %p48
      %p50 = scmp.ne.s32.totalorder %s39, %s42
      %p51 = scmp.eq.s32.totalorder %s34, 1
      %p52 = por %p50, %p51
      %p53 = scmp.ne.s32.totalorder %s42, %s43
      %p54 = scmp.eq.s32.totalorder %s34, 0
      %p55 = por %p53, %p54
      %p56 = scmp.ne.s32.totalorder %s42, %s43
      %p57 = scmp.eq.s32.totalorder %s35, 1
      %p58 = por %p56, %p57
      %p60 = scmp.ne.s32.totalorder %s43, %s59
      %p61 = scmp.eq.s32.totalorder %s35, 0
      %p62 = por %p60, %p61
      %s63 = ssub.s32 %s29, %s36
      %p64 = scmp.eq.s32.totalorder %s63, 0
      %s66 = sadd.s32 %s65, 1
      %s67 = scalar_select %p64, %s65, %s66
      %p70 = pneg %p64
      %p71 = scmp.eq.s32.totalorder %s29, 1
      %p72 = por %p70, %p71
      %p73 = scmp.ne.s32.totalorder %s65, %s68
      %p74 = scmp.eq.s32.totalorder %s29, 0
      %p75 = por %p73, %p74
      %p76 = scmp.ne.s32.totalorder %s65, %s68
      %p77 = scmp.eq.s32.totalorder %s34, 1
      %p78 = por %p76, %p77
      %p79 = scmp.ne.s32.totalorder %s68, %s69
      %p80 = scmp.eq.s32.totalorder %s34, 0
      %p81 = por %p79, %p80
      %p82 = scmp.ne.s32.totalorder %s68, %s69
      %p83 = scmp.eq.s32.totalorder %s35, 1
      %p84 = por %p82, %p83
      %p86 = scmp.ne.s32.totalorder %s69, %s85
      %p87 = scmp.eq.s32.totalorder %s35, 0
      %p88 = por %p86, %p87
      %s90 = sadd.s32 %s89, 1
      %p93 = scmp.eq.s32.totalorder %s29, 1
      %p94 = scmp.ne.s32.totalorder %s89, %s91
      %p95 = scmp.eq.s32.totalorder %s29, 0
      %p96 = por %p94, %p95
      %p97 = scmp.ne.s32.totalorder %s89, %s91
      %p98 = scmp.eq.s32.totalorder %s34, 1
      %p99 = por %p97, %p98
      %p100 = scmp.ne.s32.totalorder %s91, %s92
      %p101 = scmp.eq.s32.totalorder %s34, 0
      %p102 = por %p100, %p101
      %p103 = scmp.ne.s32.totalorder %s91, %s92
      %p104 = scmp.eq.s32.totalorder %s35, 1
      %p105 = por %p103, %p104
      %p107 = scmp.ne.s32.totalorder %s92, %s106
      %p108 = scmp.eq.s32.totalorder %s35, 0
      %p109 = por %p107, %p108
      %s111 = sadd.s32 %s110, 1
      %p114 = scmp.eq.s32.totalorder %s29, 1
      %p115 = scmp.ne.s32.totalorder %s110, %s112
      %p116 = scmp.eq.s32.totalorder %s29, 0
      %p117 = por %p115, %p116
      %p118 = scmp.ne.s32.totalorder %s110, %s112
      %p119 = scmp.eq.s32.totalorder %s34, 1
      %p120 = por %p118, %p119
      %p121 = scmp.ne.s32.totalorder %s112, %s113
      %p122 = scmp.eq.s32.totalorder %s34, 0
      %p123 = por %p121, %p122
      %p124 = scmp.ne.s32.totalorder %s112, %s113
      %p125 = scmp.eq.s32.totalorder %s35, 1
      %p126 = por %p124, %p125
      %p128 = scmp.ne.s32.totalorder %s113, %s127
      %p129 = scmp.eq.s32.totalorder %s35, 0
      %p130 = por %p128, %p129
      %s132 = sadd.s32 %s131, 1
      %p135 = scmp.eq.s32.totalorder %s29, 1
      %p136 = scmp.ne.s32.totalorder %s131, %s133
      %p137 = scmp.eq.s32.totalorder %s29, 0
      %p138 = por %p136, %p137
      %p139 = scmp.ne.s32.totalorder %s131, %s133
      %p140 = scmp.eq.s32.totalorder %s34, 1
      %p141 = por %p139, %p140
      %p142 = scmp.ne.s32.totalorder %s133, %s134
      %p143 = scmp.eq.s32.totalorder %s34, 0
      %p144 = por %p142, %p143
      %p145 = scmp.ne.s32.totalorder %s133, %s134
      %p146 = scmp.eq.s32.totalorder %s35, 1
      %p147 = por %p145, %p146
      %p149 = scmp.ne.s32.totalorder %s134, %s148
      %p150 = scmp.eq.s32.totalorder %s35, 0
      %p151 = por %p149, %p150
      %s153 = sadd.s32 %s152, 1
      %p156 = scmp.eq.s32.totalorder %s29, 1
      %p157 = scmp.ne.s32.totalorder %s152, %s154
      %p158 = scmp.eq.s32.totalorder %s29, 0
      %p159 = por %p157, %p158
      %p160 = scmp.ne.s32.totalorder %s152, %s154
      %p161 = scmp.eq.s32.totalorder %s34, 1
      %p162 = por %p160, %p161
      %p163 = scmp.ne.s32.totalorder %s154, %s155
      %p164 = scmp.eq.s32.totalorder %s34, 0
      %p165 = por %p163, %p164
      %p166 = scmp.ne.s32.totalorder %s154, %s155
      %p167 = scmp.eq.s32.totalorder %s35, 1
      %p168 = por %p166, %p167
      %p170 = scmp.ne.s32.totalorder %s155, %s169
      %p171 = scmp.eq.s32.totalorder %s35, 0
      %p172 = por %p170, %p171
      %s174 = sadd.s32 %s173, 1
      %p177 = scmp.eq.s32.totalorder %s29, 1
      %p178 = scmp.ne.s32.totalorder %s173, %s175
      %p179 = scmp.eq.s32.totalorder %s29, 0
      %p180 = por %p178, %p179
      %p181 = scmp.ne.s32.totalorder %s173, %s175
      %p182 = scmp.eq.s32.totalorder %s34, 1
      %p183 = por %p181, %p182
      %p184 = scmp.ne.s32.totalorder %s175, %s176
      %p185 = scmp.eq.s32.totalorder %s34, 0
      %p186 = por %p184, %p185
      %p187 = scmp.ne.s32.totalorder %s175, %s176
      %p188 = scmp.eq.s32.totalorder %s35, 1
      %p189 = por %p187, %p188
      %p191 = scmp.ne.s32.totalorder %s176, %s190
      %p192 = scmp.eq.s32.totalorder %s35, 0
      %p193 = por %p191, %p192
      %s195 = sadd.s32 %s194, 1
      %p198 = scmp.eq.s32.totalorder %s29, 1
      %p199 = scmp.ne.s32.totalorder %s194, %s196
      %p200 = scmp.eq.s32.totalorder %s29, 0
      %p201 = por %p199, %p200
      %p202 = scmp.ne.s32.totalorder %s194, %s196
      %p203 = scmp.eq.s32.totalorder %s34, 1
      %p204 = por %p202, %p203
      %p205 = scmp.ne.s32.totalorder %s196, %s197
      %p206 = scmp.eq.s32.totalorder %s34, 0
      %p207 = por %p205, %p206
      %p208 = scmp.ne.s32.totalorder %s196, %s197
      %p209 = scmp.eq.s32.totalorder %s35, 1
      %p210 = por %p208, %p209
      %p212 = scmp.ne.s32.totalorder %s197, %s211
      %p213 = scmp.eq.s32.totalorder %s35, 0
      %p214 = por %p212, %p213
      %s216 = sadd.s32 %s215, 1
      %p219 = scmp.eq.s32.totalorder %s29, 1
      %p220 = scmp.ne.s32.totalorder %s215, %s217
      %p221 = scmp.eq.s32.totalorder %s29, 0
      %p222 = por %p220, %p221
      %p223 = scmp.ne.s32.totalorder %s215, %s217
      %p224 = scmp.eq.s32.totalorder %s34, 1
      %p225 = por %p223, %p224
      %p226 = scmp.ne.s32.totalorder %s217, %s218
      %p227 = scmp.eq.s32.totalorder %s34, 0
      %p228 = por %p226, %p227
      %p229 = scmp.ne.s32.totalorder %s217, %s218
      %p230 = scmp.eq.s32.totalorder %s35, 1
      %p231 = por %p229, %p230
      %p233 = scmp.ne.s32.totalorder %s218, %s232
      %p234 = scmp.eq.s32.totalorder %s35, 0
      %p235 = por %p233, %p234
      %s237 = sadd.s32 %s236, 1
      %p240 = scmp.eq.s32.totalorder %s29, 1
      %p241 = scmp.ne.s32.totalorder %s236, %s238
      %p242 = scmp.eq.s32.totalorder %s29, 0
      %p243 = por %p241, %p242
      %p244 = scmp.ne.s32.totalorder %s236, %s238
      %p245 = scmp.eq.s32.totalorder %s34, 1
      %p246 = por %p244, %p245
      %p247 = scmp.ne.s32.totalorder %s238, %s239
      %p248 = scmp.eq.s32.totalorder %s34, 0
      %p249 = por %p247, %p248
      %p250 = scmp.ne.s32.totalorder %s238, %s239
      %p251 = scmp.eq.s32.totalorder %s35, 1
      %p252 = por %p250, %p251
      %p254 = scmp.ne.s32.totalorder %s239, %s253
      %p255 = scmp.eq.s32.totalorder %s35, 0
      %p256 = por %p254, %p255
      %s258 = sadd.s32 %s257, 1
      %p261 = scmp.eq.s32.totalorder %s29, 1
      %p262 = scmp.ne.s32.totalorder %s257, %s259
      %p263 = scmp.eq.s32.totalorder %s29, 0
      %p264 = por %p262, %p263
      %p265 = scmp.ne.s32.totalorder %s257, %s259
      %p266 = scmp.eq.s32.totalorder %s34, 1
      %p267 = por %p265, %p266
      %p268 = scmp.ne.s32.totalorder %s259, %s260
      %p269 = scmp.eq.s32.totalorder %s34, 0
      %p270 = por %p268, %p269
      %p271 = scmp.ne.s32.totalorder %s259, %s260
      %p272 = scmp.eq.s32.totalorder %s35, 1
      %p273 = por %p271, %p272
      %p275 = scmp.ne.s32.totalorder %s260, %s274
      %p276 = scmp.eq.s32.totalorder %s35, 0
      %p277 = por %p275, %p276
      %s279 = sadd.s32 %s278, 1
      %p282 = scmp.eq.s32.totalorder %s29, 1
      %p283 = scmp.ne.s32.totalorder %s278, %s280
      %p284 = scmp.eq.s32.totalorder %s29, 0
      %p285 = por %p283, %p284
      %p286 = scmp.ne.s32.totalorder %s278, %s280
      %p287 = scmp.eq.s32.totalorder %s34, 1
      %p288 = por %p286, %p287
      %p289 = scmp.ne.s32.totalorder %s280, %s281
      %p290 = scmp.eq.s32.totalorder %s34, 0
      %p291 = por %p289, %p290
      %p292 = scmp.ne.s32.totalorder %s280, %s281
      %p293 = scmp.eq.s32.totalorder %s35, 1
      %p294 = por %p292, %p293
      %p296 = scmp.ne.s32.totalorder %s281, %s295
      %p297 = scmp.eq.s32.totalorder %s35, 0
      %p298 = por %p296, %p297
      %s299 = ssub.s32 %s29, %s36
      %p300 = scmp.eq.s32.totalorder %s299, 0
      %s302 = sadd.s32 %s301, 1
      %s303 = scalar_select %p300, %s301, %s302
      %p306 = pneg %p300
      %p307 = scmp.eq.s32.totalorder %s29, 1
      %p308 = por %p306, %p307
      %p309 = scmp.ne.s32.totalorder %s301, %s304
      %p310 = scmp.eq.s32.totalorder %s29, 0
      %p311 = por %p309, %p310
      %p312 = scmp.ne.s32.totalorder %s301, %s304
      %p313 = scmp.eq.s32.totalorder %s34, 1
      %p314 = por %p312, %p313
      %p315 = scmp.ne.s32.totalorder %s304, %s305
      %p316 = scmp.eq.s32.totalorder %s34, 0
      %p317 = por %p315, %p316
      %p318 = scmp.ne.s32.totalorder %s304, %s305
      %p319 = scmp.eq.s32.totalorder %s35, 1
      %p320 = por %p318, %p319
      %p322 = scmp.ne.s32.totalorder %s305, %s321
      %p323 = scmp.eq.s32.totalorder %s35, 0
      %p324 = por %p322, %p323
      %p325 = scmp.le.s32.totalorder 1, %s29
      %p326 = scmp.lt.s32.totalorder %s29, 3
      %p327 = pnand %p325, %p326
      %p328 = pneg %p327
      // Predicated region
      $region9: #{tpu_custom_call.1} parent=5 // pred_check
        _
      $region10: #{tpu_custom_call.1} parent=5 // pred_check_branch
        %330 = sbr.rel (%p327) target = $region12
      $region11: #{tpu_custom_call.1} parent=5 // pred_region
        %s331 = ssub.s32 %s29, 1
        // Predicated region
        $region13: #{tpu_custom_call.1} parent=11 // pred_check
          %p332 = pneg %p102
        $region14: #{tpu_custom_call.1} parent=11 // pred_check_branch
          %334 = sbr.rel (%p332) target = $region16
        $region15: #{tpu_custom_call.1} parent=11 // pred_region
          %s336 = ssub.s32 512, 512
          %337 = vsyncadd [#allocation7], %s336
          %s338 = sshll.u32 [#allocation8], 4
          %s339 = int_to_ptr.vmem [resolvable:$true] %s338
          %344 = dma.hbm_to_vmem [thread:$0]  %s2, 512, %s339, [#allocation7], 128, 128, 8
        $region16: #{tpu_custom_call.1} parent=11 // pred_fallthru
          _
        // Predicated region
        $region17: #{tpu_custom_call.1} parent=11 // pred_check
          %p345 = pneg %p123
        $region18: #{tpu_custom_call.1} parent=11 // pred_check_branch
          %347 = sbr.rel (%p345) target = $region20
        $region19: #{tpu_custom_call.1} parent=11 // pred_region
          _
        $region20: #{tpu_custom_call.1} parent=11 // pred_fallthru
          _
        // Predicated region
        $region21: #{tpu_custom_call.1} parent=11 // pred_check
          %p348 = pneg %p144
        $region22: #{tpu_custom_call.1} parent=11 // pred_check_branch
          %350 = sbr.rel (%p348) target = $region24
        $region23: #{tpu_custom_call.1} parent=11 // pred_region
          %s352 = ssub.s32 512, 512
          %353 = vsyncadd [#allocation10], %s352
          %s354 = sshll.u32 [#allocation9], 4
          %s355 = int_to_ptr.vmem [resolvable:$true] %s354
          %360 = dma.hbm_to_vmem [thread:$0]  %s4, 512, %s355, [#allocation10], 128, 128, 8
        $region24: #{tpu_custom_call.1} parent=11 // pred_fallthru
          _
        // Predicated region
        $region25: #{tpu_custom_call.1} parent=11 // pred_check
          %p361 = pneg %p165
        $region26: #{tpu_custom_call.1} parent=11 // pred_check_branch
          %363 = sbr.rel (%p361) target = $region28
        $region27: #{tpu_custom_call.1} parent=11 // pred_region
          _
        $region28: #{tpu_custom_call.1} parent=11 // pred_fallthru
          _
        // Predicated region
        $region29: #{tpu_custom_call.1} parent=11 // pred_check
          %p364 = pneg %p186
        $region30: #{tpu_custom_call.1} parent=11 // pred_check_branch
          %366 = sbr.rel (%p364) target = $region32
        $region31: #{tpu_custom_call.1} parent=11 // pred_region
          %s368 = ssub.s32 512, 512
          %369 = vsyncadd [#allocation10], %s368
          %s370 = sshll.u32 [#allocation11], 4
          %s371 = int_to_ptr.vmem [resolvable:$true] %s370
          %376 = dma.hbm_to_vmem [thread:$0]  %s6, 512, %s371, [#allocation10], 128, 128, 8
        $region32: #{tpu_custom_call.1} parent=11 // pred_fallthru
          _
        // Predicated region
        $region33: #{tpu_custom_call.1} parent=11 // pred_check
          %p377 = pneg %p207
        $region34: #{tpu_custom_call.1} parent=11 // pred_check_branch
          %379 = sbr.rel (%p377) target = $region36
        $region35: #{tpu_custom_call.1} parent=11 // pred_region
          _
        $region36: #{tpu_custom_call.1} parent=11 // pred_fallthru
          _
        // Predicated region
        $region37: #{tpu_custom_call.1} parent=11 // pred_check
          %p380 = pneg %p228
        $region38: #{tpu_custom_call.1} parent=11 // pred_check_branch
          %382 = sbr.rel (%p380) target = $region40
        $region39: #{tpu_custom_call.1} parent=11 // pred_region
          %s384 = ssub.s32 512, 512
          %385 = vsyncadd [#allocation13], %s384
          %s386 = sshll.u32 [#allocation12], 4
          %s387 = int_to_ptr.vmem [resolvable:$true] %s386
          %392 = dma.hbm_to_vmem [thread:$0]  %s8, 512, %s387, [#allocation13], 128, 128, 8
        $region40: #{tpu_custom_call.1} parent=11 // pred_fallthru
          _
        // Predicated region
        $region41: #{tpu_custom_call.1} parent=11 // pred_check
          %p393 = pneg %p249
        $region42: #{tpu_custom_call.1} parent=11 // pred_check_branch
          %395 = sbr.rel (%p393) target = $region44
        $region43: #{tpu_custom_call.1} parent=11 // pred_region
          _
        $region44: #{tpu_custom_call.1} parent=11 // pred_fallthru
          _
        // Predicated region
        $region45: #{tpu_custom_call.1} parent=11 // pred_check
          %p396 = pneg %p270
        $region46: #{tpu_custom_call.1} parent=11 // pred_check_branch
          %398 = sbr.rel (%p396) target = $region48
        $region47: #{tpu_custom_call.1} parent=11 // pred_region
          _
        $region48: #{tpu_custom_call.1} parent=11 // pred_fallthru
          _
        // Predicated region
        $region49: #{tpu_custom_call.1} parent=11 // pred_check
          %p399 = pneg %p291
        $region50: #{tpu_custom_call.1} parent=11 // pred_check_branch
          %401 = sbr.rel (%p399) target = $region52
        $region51: #{tpu_custom_call.1} parent=11 // pred_region
          _
        $region52: #{tpu_custom_call.1} parent=11 // pred_fallthru
          _
      $region12: #{tpu_custom_call.1} parent=5 // pred_fallthru
        _
      %p402 = scmp.lt.s32.totalorder %s29, 2
      // Predicated region
      $region53: #{tpu_custom_call.1} parent=5 // pred_check
        %p403 = pneg %p402
      $region54: #{tpu_custom_call.1} parent=5 // pred_check_branch
        %405 = sbr.rel (%p403) target = $region56
      $region55: #{tpu_custom_call.1} parent=5 // pred_region
        // Predicated region
        $region57: #{tpu_custom_call.1} parent=55 // pred_check
          %p406 = pneg %p49
        $region58: #{tpu_custom_call.1} parent=55 // pred_check_branch
          %408 = sbr.rel (%p406) target = $region60
        $region59: #{tpu_custom_call.1} parent=55 // pred_region
          %s409 = sand.u32 %s39, 1
          %s410 = scalar_lea.sflag [#allocation4], %s409
          %s411 = sand.u32 %s39, 1
          %s412 = smul.addr %s411, 8
          %s413 = scalar_lea.vmem [#allocation3], %s412
          %s415 = ssub.s32 128, 128
          %416 = vsyncadd %s410, %s415
          %s417 = smul.addr %s29, 128
          %s418 = scalar_lea.hbm %s0, %s417
          %s420 = sshll.u32 %s413, 4
          %s421 = int_to_ptr.vmem [resolvable:$true] %s420
          %423 = dma.hbm_to_vmem [thread:$0]  %s418, 128, %s421, %s410
        $region60: #{tpu_custom_call.1} parent=55 // pred_fallthru
          _
        // Predicated region
        $region61: #{tpu_custom_call.1} parent=55 // pred_check
          %p424 = pneg %p75
        $region62: #{tpu_custom_call.1} parent=55 // pred_check_branch
          %426 = sbr.rel (%p424) target = $region64
        $region63: #{tpu_custom_call.1} parent=55 // pred_region
          %s427 = sand.u32 %s29, 1
          %s428 = scalar_lea.sflag [#allocation7], %s427
          %s429 = sand.u32 %s65, 1
          %s430 = scalar_lea.vmem [#allocation6], %s429
          %s432 = ssub.s32 16, 16
          %433 = vsyncadd %s428, %s432
          %s434 = smul.addr %s29, 16
          %s435 = scalar_lea.hbm %s1, %s434
          %s437 = sshll.u32 %s430, 4
          %s438 = int_to_ptr.vmem [resolvable:$true] %s437
          %440 = dma.hbm_to_vmem [thread:$0]  %s435, 16, %s438, %s428
        $region64: #{tpu_custom_call.1} parent=55 // pred_fallthru
          _
      $region56: #{tpu_custom_call.1} parent=5 // pred_fallthru
        _
      %p441 = scmp.le.s32.totalorder 1, %s29
      %p442 = scmp.lt.s32.totalorder %s29, 3
      %p443 = pnand %p441, %p442
      %p444 = pneg %p443
      // Predicated region
      $region65: #{tpu_custom_call.1} parent=5 // pred_check
        _
      $region66: #{tpu_custom_call.1} parent=5 // pred_check_branch
        %446 = sbr.rel (%p443) target = $region68
      $region67: #{tpu_custom_call.1} parent=5 // pred_region
        %s447 = ssub.s32 %s29, 1
        %s448 = sand.u32 %s42, 1
        %s449 = scalar_lea.sflag [#allocation4], %s448
        %s450 = sand.u32 %s42, 1
        %s451 = smul.addr %s450, 8
        %s452 = scalar_lea.vmem [#allocation3], %s451
        // Predicated region
        $region69: #{tpu_custom_call.1} parent=67 // pred_check
          %p453 = pneg %p55
        $region70: #{tpu_custom_call.1} parent=67 // pred_check_branch
          %455 = sbr.rel (%p453) target = $region72
        $region71: #{tpu_custom_call.1} parent=67 // pred_region
          %456 = dma.done %s449, 128
        $region72: #{tpu_custom_call.1} parent=67 // pred_fallthru
          _
        %s457 = sand.u32 %s34, 1
        %s458 = scalar_lea.sflag [#allocation7], %s457
        %s459 = sand.u32 %s68, 1
        %s460 = scalar_lea.vmem [#allocation6], %s459
        // Predicated region
        $region73: #{tpu_custom_call.1} parent=67 // pred_check
          %p461 = pneg %p81
        $region74: #{tpu_custom_call.1} parent=67 // pred_check_branch
          %463 = sbr.rel (%p461) target = $region76
        $region75: #{tpu_custom_call.1} parent=67 // pred_region
          %464 = dma.done %s458, 16
        $region76: #{tpu_custom_call.1} parent=67 // pred_fallthru
          _
        // Predicated region
        $region77: #{tpu_custom_call.1} parent=67 // pred_check
          %p465 = pneg %p102
        $region78: #{tpu_custom_call.1} parent=67 // pred_check_branch
          %467 = sbr.rel (%p465) target = $region80
        $region79: #{tpu_custom_call.1} parent=67 // pred_region
          %468 = dma.done [#allocation7], 512
        $region80: #{tpu_custom_call.1} parent=67 // pred_fallthru
          _
        // Predicated region
        $region81: #{tpu_custom_call.1} parent=67 // pred_check
          %p469 = pneg %p144
        $region82: #{tpu_custom_call.1} parent=67 // pred_check_branch
          %471 = sbr.rel (%p469) target = $region84
        $region83: #{tpu_custom_call.1} parent=67 // pred_region
          %472 = dma.done [#allocation10], 512
        $region84: #{tpu_custom_call.1} parent=67 // pred_fallthru
          _
        // Predicated region
        $region85: #{tpu_custom_call.1} parent=67 // pred_check
          %p473 = pneg %p186
        $region86: #{tpu_custom_call.1} parent=67 // pred_check_branch
          %475 = sbr.rel (%p473) target = $region88
        $region87: #{tpu_custom_call.1} parent=67 // pred_region
          %476 = dma.done [#allocation10], 512
        $region88: #{tpu_custom_call.1} parent=67 // pred_fallthru
          _
        // Predicated region
        $region89: #{tpu_custom_call.1} parent=67 // pred_check
          %p477 = pneg %p228
        $region90: #{tpu_custom_call.1} parent=67 // pred_check_branch
          %479 = sbr.rel (%p477) target = $region92
        $region91: #{tpu_custom_call.1} parent=67 // pred_region
          %480 = dma.done [#allocation13], 512
        $region92: #{tpu_custom_call.1} parent=67 // pred_fallthru
          _
        %s481 = sand.u32 %s42, 1
        %s482 = scalar_lea.sflag [#allocation4], %s481
        %s483 = sand.u32 %s42, 1
        %s484 = smul.addr %s483, 8
        %s485 = scalar_lea.vmem [#allocation3], %s484
        %p486 = pneg %p55
        %p487 = pneg %p52
        %s488 = sand.u32 %s34, 1
        %s489 = scalar_lea.sflag [#allocation7], %s488
        %s490 = sand.u32 %s68, 1
        %s491 = scalar_lea.vmem [#allocation6], %s490
        %p492 = pneg %p81
        %p493 = pneg %p78
        %p494 = pneg %p102
        %p495 = pneg %p99
        %p496 = pneg %p123
        %p497 = pneg %p120
        %p498 = pneg %p144
        %p499 = pneg %p141
        %p500 = pneg %p165
        %p501 = pneg %p162
        %p502 = pneg %p186
        %p503 = pneg %p183
        %p504 = pneg %p207
        %p505 = pneg %p204
        %p506 = pneg %p228
        %p507 = pneg %p225
        %p508 = pneg %p249
        %p509 = pneg %p246
        %p510 = pneg %p270
        %p511 = pneg %p267
        %p512 = pneg %p291
        %p513 = pneg %p288
        %p514 = pneg %p317
        %p515 = pneg %p314
        %s516 = sand.u32 %s304, 1
        %s517 = scalar_lea.sflag [#allocation5], %s516
        %s518 = sand.u32 %s304, 1
        %s519 = smul.addr %s518, 8
        %s520 = scalar_lea.vmem [#allocation14], %s519
        %v521 = vld [vmem:[%s452] sm:$0xff]
        %v522 = vld [vmem:[#allocation8] sm:$0xff]
        %v523 = vld [vmem:[#allocation8 + $0x8] sm:$0xff]
        %v524 = vld [vmem:[#allocation8 + $0x10] sm:$0xff]
        %v525 = vld [vmem:[#allocation8 + $0x18] sm:$0xff]
        %v526 = vld [vmem:[%s3] sm:$0x1]
        %v528 = vlaneseq
        %v529 = vshrl.u32 %v528, 7
        %v530 = vsub.s32 0, %v529
        %v531 = vrot.slane %v526, %v530
        %vm533 = vcmask 261120
        %v535 = vsel %vm533, %v521, 0
        %v538 = vsel %vm533, %v522, 0
        %v541 = vsel %vm533, %v523, 0
        %v544 = vsel %vm533, %v524, 0
        %v547 = vsel %vm533, %v525, 0
        %549 = vmatprep.subr.mxu0 0.0
        %550 = vmatpush1.xpose.msra.mxu0 0.0
        %551 = vmatprep.subr.mxu0 0.0
        %552 = vmatpush1.xpose.msra.mxu0 0.0
        %553 = vmatprep.subr.mxu0 0.0
        %554 = vmatpush1.xpose.msra.mxu0 0.0
        %555 = vmatprep.subr.mxu0 0.0
        %556 = vmatpush1.xpose.msra.mxu0 0.0
        %557 = vmatprep.subr.mxu0 0.0
        %558 = vmatpush1.xpose.msra.mxu0 0.0
        %559 = vmatprep.subr.mxu0 0.0
        %560 = vmatpush1.xpose.msra.mxu0 0.0
        %561 = vmatprep.subr.mxu0 0.0
        %562 = vmatpush1.xpose.msra.mxu0 0.0
        %563 = vmatprep.subr.mxu0 0.0
        %564 = vmatpush1.xpose.msra.mxu0 0.0
        %565 = vmatprep.subr.mxu0 0.0
        %566 = vmatpush1.xpose.msra.mxu0 0.0
        %567 = vmatprep.subr.mxu0 0.0
        %568 = vmatpush1.xpose.msra.mxu0 0.0
        %569 = vmatprep.subr.mxu0 0.0
        %570 = vmatpush1.xpose.msra.mxu0 0.0
        %571 = vmatprep.subr.mxu0 0.0
        %572 = vmatpush1.xpose.msra.mxu0 0.0
        %573 = vmatprep.subr.mxu0 0.0
        %574 = vmatpush1.xpose.msra.mxu0 %v547
        %575 = vmatprep.subr.mxu0 0.0
        %576 = vmatpush1.xpose.msra.mxu0 %v544
        %577 = vmatprep.subr.mxu0 0.0
        %578 = vmatpush1.xpose.msra.mxu0 %v541
        %579 = vmatprep.subr.mxu0 0.0
        %580 = vmatpush1.xpose.msra.mxu0 %v538
        %581 = vmatprep.subr.mxu0 0.0
        %582 = vmatpush2.xpose.msra.mxu0 0.0
        %583 = vmatprep.subr.mxu0 0.0
        %584 = vmatpush2.xpose.msra.mxu0 0.0
        %585 = vmatprep.subr.mxu0 0.0
        %586 = vmatpush2.xpose.msra.mxu0 0.0
        %587 = vmatprep.subr.mxu0 0.0
        %588 = vmatpush2.xpose.msra.mxu0 0.0
        %589 = vmatprep.subr.mxu0 0.0
        %590 = vmatpush2.xpose.msra.mxu0 0.0
        %591 = vmatprep.subr.mxu0 0.0
        %592 = vmatpush2.xpose.msra.mxu0 0.0
        %593 = vmatprep.subr.mxu0 0.0
        %594 = vmatpush2.xpose.msra.mxu0 0.0
        %595 = vmatprep.subr.mxu0 0.0
        %596 = vmatpush2.xpose.msra.mxu0 0.0
        %597 = vmatprep.subr.mxu0 0.0
        %598 = vmatpush2.xpose.msra.mxu0 0.0
        %599 = vmatprep.subr.mxu0 0.0
        %600 = vmatpush2.xpose.msra.mxu0 0.0
        %601 = vmatprep.subr.mxu0 0.0
        %602 = vmatpush2.xpose.msra.mxu0 0.0
        %603 = vmatprep.subr.mxu0 0.0
        %604 = vmatpush2.xpose.msra.mxu0 0.0
        %605 = vmatprep.subr.mxu0 0.0
        %606 = vmatpush2.xpose.msra.mxu0 0.0
        %607 = vmatprep.subr.mxu0 0.0
        %608 = vmatpush2.xpose.msra.mxu0 0.0
        %609 = vmatprep.subr.mxu0 0.0
        %610 = vmatpush2.xpose.msra.mxu0 0.0
        %611 = vmatprep.subr.mxu0 0.0
        %612 = vmatpush2.xpose.msra.mxu0 0.0
        %613 = vmatprep.mubr.f32.mxu0 0.0
        %614 = vmatmul.mubr.f32.gmra.mxu0 %v535
        %v615 = vpop.f32.mrf.mxu0
        %v616 = vadd.f32 %v531, %v615
        %v617 = vpop.f32.mrf.mxu0
        %618 = vdwg.mxu0
        %v619 = vld [vmem:[#allocation9] sm:$0xff]
        %v620 = vld [vmem:[#allocation9 + $0x8] sm:$0xff]
        %v621 = vld [vmem:[#allocation9 + $0x10] sm:$0xff]
        %v622 = vld [vmem:[#allocation9 + $0x18] sm:$0xff]
        %v623 = vld [vmem:[%s5] sm:$0x1]
        %v625 = vlaneseq
        %v626 = vshrl.u32 %v625, 7
        %v627 = vsub.s32 0, %v626
        %v628 = vrot.slane %v623, %v627
        %v631 = vsel %vm533, %v619, 0
        %v634 = vsel %vm533, %v620, 0
        %v637 = vsel %vm533, %v621, 0
        %v640 = vsel %vm533, %v622, 0
        %642 = vmatprep.subr.mxu0 0.0
        %643 = vmatpush1.xpose.msra.mxu0 0.0
        %644 = vmatprep.subr.mxu0 0.0
        %645 = vmatpush1.xpose.msra.mxu0 0.0
        %646 = vmatprep.subr.mxu0 0.0
        %647 = vmatpush1.xpose.msra.mxu0 0.0
        %648 = vmatprep.subr.mxu0 0.0
        %649 = vmatpush1.xpose.msra.mxu0 0.0
        %650 = vmatprep.subr.mxu0 0.0
        %651 = vmatpush1.xpose.msra.mxu0 0.0
        %652 = vmatprep.subr.mxu0 0.0
        %653 = vmatpush1.xpose.msra.mxu0 0.0
        %654 = vmatprep.subr.mxu0 0.0
        %655 = vmatpush1.xpose.msra.mxu0 0.0
        %656 = vmatprep.subr.mxu0 0.0
        %657 = vmatpush1.xpose.msra.mxu0 0.0
        %658 = vmatprep.subr.mxu0 0.0
        %659 = vmatpush1.xpose.msra.mxu0 0.0
        %660 = vmatprep.subr.mxu0 0.0
        %661 = vmatpush1.xpose.msra.mxu0 0.0
        %662 = vmatprep.subr.mxu0 0.0
        %663 = vmatpush1.xpose.msra.mxu0 0.0
        %664 = vmatprep.subr.mxu0 0.0
        %665 = vmatpush1.xpose.msra.mxu0 0.0
        %666 = vmatprep.subr.mxu0 0.0
        %667 = vmatpush1.xpose.msra.mxu0 %v640
        %668 = vmatprep.subr.mxu0 0.0
        %669 = vmatpush1.xpose.msra.mxu0 %v637
        %670 = vmatprep.subr.mxu0 0.0
        %671 = vmatpush1.xpose.msra.mxu0 %v634
        %672 = vmatprep.subr.mxu0 0.0
        %673 = vmatpush1.xpose.msra.mxu0 %v631
        %674 = vmatprep.subr.mxu0 0.0
        %675 = vmatpush2.xpose.msra.mxu0 0.0
        %676 = vmatprep.subr.mxu0 0.0
        %677 = vmatpush2.xpose.msra.mxu0 0.0
        %678 = vmatprep.subr.mxu0 0.0
        %679 = vmatpush2.xpose.msra.mxu0 0.0
        %680 = vmatprep.subr.mxu0 0.0
        %681 = vmatpush2.xpose.msra.mxu0 0.0
        %682 = vmatprep.subr.mxu0 0.0
        %683 = vmatpush2.xpose.msra.mxu0 0.0
        %684 = vmatprep.subr.mxu0 0.0
        %685 = vmatpush2.xpose.msra.mxu0 0.0
        %686 = vmatprep.subr.mxu0 0.0
        %687 = vmatpush2.xpose.msra.mxu0 0.0
        %688 = vmatprep.subr.mxu0 0.0
        %689 = vmatpush2.xpose.msra.mxu0 0.0
        %690 = vmatprep.subr.mxu0 0.0
        %691 = vmatpush2.xpose.msra.mxu0 0.0
        %692 = vmatprep.subr.mxu0 0.0
        %693 = vmatpush2.xpose.msra.mxu0 0.0
        %694 = vmatprep.subr.mxu0 0.0
        %695 = vmatpush2.xpose.msra.mxu0 0.0
        %696 = vmatprep.subr.mxu0 0.0
        %697 = vmatpush2.xpose.msra.mxu0 0.0
        %698 = vmatprep.subr.mxu0 0.0
        %699 = vmatpush2.xpose.msra.mxu0 0.0
        %700 = vmatprep.subr.mxu0 0.0
        %701 = vmatpush2.xpose.msra.mxu0 0.0
        %702 = vmatprep.subr.mxu0 0.0
        %703 = vmatpush2.xpose.msra.mxu0 0.0
        %704 = vmatprep.subr.mxu0 0.0
        %705 = vmatpush2.xpose.msra.mxu0 0.0
        %706 = vmatprep.mubr.f32.mxu0 0.0
        %707 = vmatmul.mubr.f32.gmra.mxu0 %v535
        %v708 = vpop.f32.mrf.mxu0
        %v709 = vadd.f32 %v628, %v708
        %v710 = vpop.f32.mrf.mxu0
        %711 = vdwg.mxu0
        %v712 = vld [vmem:[#allocation11] sm:$0xff]
        %v713 = vld [vmem:[#allocation11 + $0x8] sm:$0xff]
        %v714 = vld [vmem:[#allocation11 + $0x10] sm:$0xff]
        %v715 = vld [vmem:[#allocation11 + $0x18] sm:$0xff]
        %v716 = vld [vmem:[%s7] sm:$0x1]
        %v718 = vlaneseq
        %v719 = vshrl.u32 %v718, 7
        %v720 = vsub.s32 0, %v719
        %v721 = vrot.slane %v716, %v720
        %v724 = vsel %vm533, %v712, 0
        %v727 = vsel %vm533, %v713, 0
        %v730 = vsel %vm533, %v714, 0
        %v733 = vsel %vm533, %v715, 0
        %735 = vmatprep.subr.mxu0 0.0
        %736 = vmatpush1.xpose.msra.mxu0 0.0
        %737 = vmatprep.subr.mxu0 0.0
        %738 = vmatpush1.xpose.msra.mxu0 0.0
        %739 = vmatprep.subr.mxu0 0.0
        %740 = vmatpush1.xpose.msra.mxu0 0.0
        %741 = vmatprep.subr.mxu0 0.0
        %742 = vmatpush1.xpose.msra.mxu0 0.0
        %743 = vmatprep.subr.mxu0 0.0
        %744 = vmatpush1.xpose.msra.mxu0 0.0
        %745 = vmatprep.subr.mxu0 0.0
        %746 = vmatpush1.xpose.msra.mxu0 0.0
        %747 = vmatprep.subr.mxu0 0.0
        %748 = vmatpush1.xpose.msra.mxu0 0.0
        %749 = vmatprep.subr.mxu0 0.0
        %750 = vmatpush1.xpose.msra.mxu0 0.0
        %751 = vmatprep.subr.mxu0 0.0
        %752 = vmatpush1.xpose.msra.mxu0 0.0
        %753 = vmatprep.subr.mxu0 0.0
        %754 = vmatpush1.xpose.msra.mxu0 0.0
        %755 = vmatprep.subr.mxu0 0.0
        %756 = vmatpush1.xpose.msra.mxu0 0.0
        %757 = vmatprep.subr.mxu0 0.0
        %758 = vmatpush1.xpose.msra.mxu0 0.0
        %759 = vmatprep.subr.mxu0 0.0
        %760 = vmatpush1.xpose.msra.mxu0 %v733
        %761 = vmatprep.subr.mxu0 0.0
        %762 = vmatpush1.xpose.msra.mxu0 %v730
        %763 = vmatprep.subr.mxu0 0.0
        %764 = vmatpush1.xpose.msra.mxu0 %v727
        %765 = vmatprep.subr.mxu0 0.0
        %766 = vmatpush1.xpose.msra.mxu0 %v724
        %767 = vmatprep.subr.mxu0 0.0
        %768 = vmatpush2.xpose.msra.mxu0 0.0
        %769 = vmatprep.subr.mxu0 0.0
        %770 = vmatpush2.xpose.msra.mxu0 0.0
        %771 = vmatprep.subr.mxu0 0.0
        %772 = vmatpush2.xpose.msra.mxu0 0.0
        %773 = vmatprep.subr.mxu0 0.0
        %774 = vmatpush2.xpose.msra.mxu0 0.0
        %775 = vmatprep.subr.mxu0 0.0
        %776 = vmatpush2.xpose.msra.mxu0 0.0
        %777 = vmatprep.subr.mxu0 0.0
        %778 = vmatpush2.xpose.msra.mxu0 0.0
        %779 = vmatprep.subr.mxu0 0.0
        %780 = vmatpush2.xpose.msra.mxu0 0.0
        %781 = vmatprep.subr.mxu0 0.0
        %782 = vmatpush2.xpose.msra.mxu0 0.0
        %783 = vmatprep.subr.mxu0 0.0
        %784 = vmatpush2.xpose.msra.mxu0 0.0
        %785 = vmatprep.subr.mxu0 0.0
        %786 = vmatpush2.xpose.msra.mxu0 0.0
        %787 = vmatprep.subr.mxu0 0.0
        %788 = vmatpush2.xpose.msra.mxu0 0.0
        %789 = vmatprep.subr.mxu0 0.0
        %790 = vmatpush2.xpose.msra.mxu0 0.0
        %791 = vmatprep.subr.mxu0 0.0
        %792 = vmatpush2.xpose.msra.mxu0 0.0
        %793 = vmatprep.subr.mxu0 0.0
        %794 = vmatpush2.xpose.msra.mxu0 0.0
        %795 = vmatprep.subr.mxu0 0.0
        %796 = vmatpush2.xpose.msra.mxu0 0.0
        %797 = vmatprep.subr.mxu0 0.0
        %798 = vmatpush2.xpose.msra.mxu0 0.0
        %799 = vmatprep.mubr.f32.mxu0 0.0
        %800 = vmatmul.mubr.f32.gmra.mxu0 %v535
        %v801 = vpop.f32.mrf.mxu0
        %v802 = vadd.f32 %v721, %v801
        %v803 = vpop.f32.mrf.mxu0
        %804 = vdwg.mxu0
        %v805 = vld [vmem:[%s460] sm:$0x1]
        %vm806 = vcmask 64512
        %v808 = vsel %vm806, %v616, 0
        %v811 = vsel %vm806, %v709, 0
        %813 = vmatprep.subr.mxu0 0.0
        %814 = vmatpush1.xpose.msra.mxu0 0.0
        %815 = vmatprep.subr.mxu0 0.0
        %816 = vmatpush1.xpose.msra.mxu0 0.0
        %817 = vmatprep.subr.mxu0 0.0
        %818 = vmatpush1.xpose.msra.mxu0 0.0
        %819 = vmatprep.subr.mxu0 0.0
        %820 = vmatpush1.xpose.msra.mxu0 0.0
        %821 = vmatprep.subr.mxu0 0.0
        %822 = vmatpush1.xpose.msra.mxu0 0.0
        %823 = vmatprep.subr.mxu0 0.0
        %824 = vmatpush1.xpose.msra.mxu0 0.0
        %825 = vmatprep.subr.mxu0 0.0
        %826 = vmatpush1.xpose.msra.mxu0 0.0
        %827 = vmatprep.subr.mxu0 0.0
        %828 = vmatpush1.xpose.msra.mxu0 0.0
        %829 = vmatprep.subr.mxu0 0.0
        %830 = vmatpush1.xpose.msra.mxu0 0.0
        %831 = vmatprep.subr.mxu0 0.0
        %832 = vmatpush1.xpose.msra.mxu0 0.0
        %833 = vmatprep.subr.mxu0 0.0
        %834 = vmatpush1.xpose.msra.mxu0 0.0
        %835 = vmatprep.subr.mxu0 0.0
        %836 = vmatpush1.xpose.msra.mxu0 0.0
        %837 = vmatprep.subr.mxu0 0.0
        %838 = vmatpush1.xpose.msra.mxu0 0.0
        %839 = vmatprep.subr.mxu0 0.0
        %840 = vmatpush1.xpose.msra.mxu0 0.0
        %841 = vmatprep.subr.mxu0 0.0
        %842 = vmatpush1.xpose.msra.mxu0 0.0
        %843 = vmatprep.subr.mxu0 0.0
        %844 = vmatpush1.xpose.msra.mxu0 %v811
        %845 = vmatprep.subr.mxu0 0.0
        %846 = vmatpush2.xpose.msra.mxu0 0.0
        %847 = vmatprep.subr.mxu0 0.0
        %848 = vmatpush2.xpose.msra.mxu0 0.0
        %849 = vmatprep.subr.mxu0 0.0
        %850 = vmatpush2.xpose.msra.mxu0 0.0
        %851 = vmatprep.subr.mxu0 0.0
        %852 = vmatpush2.xpose.msra.mxu0 0.0
        %853 = vmatprep.subr.mxu0 0.0
        %854 = vmatpush2.xpose.msra.mxu0 0.0
        %855 = vmatprep.subr.mxu0 0.0
        %856 = vmatpush2.xpose.msra.mxu0 0.0
        %857 = vmatprep.subr.mxu0 0.0
        %858 = vmatpush2.xpose.msra.mxu0 0.0
        %859 = vmatprep.subr.mxu0 0.0
        %860 = vmatpush2.xpose.msra.mxu0 0.0
        %861 = vmatprep.subr.mxu0 0.0
        %862 = vmatpush2.xpose.msra.mxu0 0.0
        %863 = vmatprep.subr.mxu0 0.0
        %864 = vmatpush2.xpose.msra.mxu0 0.0
        %865 = vmatprep.subr.mxu0 0.0
        %866 = vmatpush2.xpose.msra.mxu0 0.0
        %867 = vmatprep.subr.mxu0 0.0
        %868 = vmatpush2.xpose.msra.mxu0 0.0
        %869 = vmatprep.subr.mxu0 0.0
        %870 = vmatpush2.xpose.msra.mxu0 0.0
        %871 = vmatprep.subr.mxu0 0.0
        %872 = vmatpush2.xpose.msra.mxu0 0.0
        %873 = vmatprep.subr.mxu0 0.0
        %874 = vmatpush2.xpose.msra.mxu0 0.0
        %875 = vmatprep.subr.mxu0 0.0
        %876 = vmatpush2.xpose.msra.mxu0 0.0
        %877 = vmatprep.mubr.f32.mxu0 0.0
        %878 = vmatmul.mubr.f32.gmra.mxu0 %v808
        %v879 = vpop.f32.mrf.mxu0
        %v880 = vadd.f32 0.0, %v879
        %v881 = vpop.f32.mrf.mxu0
        %882 = vdwg.mxu0
        %v883 = vmul.f32 %v880, 0.35355338
        %v885 = vlaneseq
        %v886 = vshrl.u32 %v885, 7
        %v887 = vsub.s32 0, %v886
        %v888 = vrot.slane %v805, %v887
        %v890 = vadd.f32 %v883, %v888
        %v891 = vsel %vm806, %v890, -inf
        %892 = vmax.xlane.f32.xlu0 %v891
        %v893 = vpop.xlane.xlu0 %892
        %v894 = vsub.f32 %v890, %v893
        %v895 = vmul.f32 %v894, 1.442695
        %v896 = vpow.pop %v895
        %v897 = vsel %vm806, %v896, 0.0
        %898 = vadd.xlane.f32.xlu0 %v897
        %v899 = vpop.xlane.xlu0 %898
        %v900 = vrcp.pop %v899
        %v901 = vmul.f32 %v896, %v900
        %v903 = vsel %vm806, %v901, 0
        %905 = vmatprep.subr.mxu0 0.0
        %906 = vmatpush1.msra.mxu0 0.0
        %907 = vmatprep.subr.mxu0 0.0
        %908 = vmatpush1.msra.mxu0 0.0
        %909 = vmatprep.subr.mxu0 0.0
        %910 = vmatpush1.msra.mxu0 0.0
        %911 = vmatprep.subr.mxu0 0.0
        %912 = vmatpush1.msra.mxu0 0.0
        %913 = vmatprep.subr.mxu0 0.0
        %914 = vmatpush1.msra.mxu0 0.0
        %915 = vmatprep.subr.mxu0 0.0
        %916 = vmatpush1.msra.mxu0 0.0
        %917 = vmatprep.subr.mxu0 0.0
        %918 = vmatpush1.msra.mxu0 0.0
        %919 = vmatprep.subr.mxu0 0.0
        %920 = vmatpush1.msra.mxu0 0.0
        %921 = vmatprep.subr.mxu0 0.0
        %922 = vmatpush1.msra.mxu0 0.0
        %923 = vmatprep.subr.mxu0 0.0
        %924 = vmatpush1.msra.mxu0 0.0
        %925 = vmatprep.subr.mxu0 0.0
        %926 = vmatpush1.msra.mxu0 0.0
        %927 = vmatprep.subr.mxu0 0.0
        %928 = vmatpush1.msra.mxu0 0.0
        %929 = vmatprep.subr.mxu0 0.0
        %930 = vmatpush1.msra.mxu0 0.0
        %931 = vmatprep.subr.mxu0 0.0
        %932 = vmatpush1.msra.mxu0 0.0
        %933 = vmatprep.subr.mxu0 0.0
        %934 = vmatpush1.msra.mxu0 0.0
        %935 = vmatprep.subr.mxu0 0.0
        %936 = vmatpush1.msra.mxu0 %v802
        %937 = vmatprep.subr.mxu0 0.0
        %938 = vmatpush2.msra.mxu0 0.0
        %939 = vmatprep.subr.mxu0 0.0
        %940 = vmatpush2.msra.mxu0 0.0
        %941 = vmatprep.subr.mxu0 0.0
        %942 = vmatpush2.msra.mxu0 0.0
        %943 = vmatprep.subr.mxu0 0.0
        %944 = vmatpush2.msra.mxu0 0.0
        %945 = vmatprep.subr.mxu0 0.0
        %946 = vmatpush2.msra.mxu0 0.0
        %947 = vmatprep.subr.mxu0 0.0
        %948 = vmatpush2.msra.mxu0 0.0
        %949 = vmatprep.subr.mxu0 0.0
        %950 = vmatpush2.msra.mxu0 0.0
        %951 = vmatprep.subr.mxu0 0.0
        %952 = vmatpush2.msra.mxu0 0.0
        %953 = vmatprep.subr.mxu0 0.0
        %954 = vmatpush2.msra.mxu0 0.0
        %955 = vmatprep.subr.mxu0 0.0
        %956 = vmatpush2.msra.mxu0 0.0
        %957 = vmatprep.subr.mxu0 0.0
        %958 = vmatpush2.msra.mxu0 0.0
        %959 = vmatprep.subr.mxu0 0.0
        %960 = vmatpush2.msra.mxu0 0.0
        %961 = vmatprep.subr.mxu0 0.0
        %962 = vmatpush2.msra.mxu0 0.0
        %963 = vmatprep.subr.mxu0 0.0
        %964 = vmatpush2.msra.mxu0 0.0
        %965 = vmatprep.subr.mxu0 0.0
        %966 = vmatpush2.msra.mxu0 0.0
        %967 = vmatprep.subr.mxu0 0.0
        %968 = vmatpush2.msra.mxu0 0.0
        %969 = vmatprep.mubr.f32.mxu0 0.0
        %970 = vmatmul.mubr.f32.gmra.mxu0 %v903
        %v971 = vpop.f32.mrf.mxu0
        %v972 = vadd.f32 0.0, %v971
        %v973 = vpop.f32.mrf.mxu0
        %974 = vdwg.mxu0
        %975 = vst.msk [vmem:[#allocation2] sm:$0xff] %vm806, %v972
        %976 = vrot.lane.b32.xlu0 %v616, 120
        %v977 = vpop.permute.xlu0 %976
        %978 = vrot.lane.b32.xlu0 %v709, 120
        %v979 = vpop.permute.xlu0 %978
        %v980 = vsel %vm806, %v977, 0
        %v982 = vsel %vm806, %v979, 0
        %984 = vmatprep.subr.mxu0 0.0
        %985 = vmatpush1.xpose.msra.mxu0 0.0
        %986 = vmatprep.subr.mxu0 0.0
        %987 = vmatpush1.xpose.msra.mxu0 0.0
        %988 = vmatprep.subr.mxu0 0.0
        %989 = vmatpush1.xpose.msra.mxu0 0.0
        %990 = vmatprep.subr.mxu0 0.0
        %991 = vmatpush1.xpose.msra.mxu0 0.0
        %992 = vmatprep.subr.mxu0 0.0
        %993 = vmatpush1.xpose.msra.mxu0 0.0
        %994 = vmatprep.subr.mxu0 0.0
        %995 = vmatpush1.xpose.msra.mxu0 0.0
        %996 = vmatprep.subr.mxu0 0.0
        %997 = vmatpush1.xpose.msra.mxu0 0.0
        %998 = vmatprep.subr.mxu0 0.0
        %999 = vmatpush1.xpose.msra.mxu0 0.0
        %1000 = vmatprep.subr.mxu0 0.0
        %1001 = vmatpush1.xpose.msra.mxu0 0.0
        %1002 = vmatprep.subr.mxu0 0.0
        %1003 = vmatpush1.xpose.msra.mxu0 0.0
        %1004 = vmatprep.subr.mxu0 0.0
        %1005 = vmatpush1.xpose.msra.mxu0 0.0
        %1006 = vmatprep.subr.mxu0 0.0
        %1007 = vmatpush1.xpose.msra.mxu0 0.0
        %1008 = vmatprep.subr.mxu0 0.0
        %1009 = vmatpush1.xpose.msra.mxu0 0.0
        %1010 = vmatprep.subr.mxu0 0.0
        %1011 = vmatpush1.xpose.msra.mxu0 0.0
        %1012 = vmatprep.subr.mxu0 0.0
        %1013 = vmatpush1.xpose.msra.mxu0 0.0
        %1014 = vmatprep.subr.mxu0 0.0
        %1015 = vmatpush1.xpose.msra.mxu0 %v982
        %1016 = vmatprep.subr.mxu0 0.0
        %1017 = vmatpush2.xpose.msra.mxu0 0.0
        %1018 = vmatprep.subr.mxu0 0.0
        %1019 = vmatpush2.xpose.msra.mxu0 0.0
        %1020 = vmatprep.subr.mxu0 0.0
        %1021 = vmatpush2.xpose.msra.mxu0 0.0
        %1022 = vmatprep.subr.mxu0 0.0
        %1023 = vmatpush2.xpose.msra.mxu0 0.0
        %1024 = vmatprep.subr.mxu0 0.0
        %1025 = vmatpush2.xpose.msra.mxu0 0.0
        %1026 = vmatprep.subr.mxu0 0.0
        %1027 = vmatpush2.xpose.msra.mxu0 0.0
        %1028 = vmatprep.subr.mxu0 0.0
        %1029 = vmatpush2.xpose.msra.mxu0 0.0
        %1030 = vmatprep.subr.mxu0 0.0
        %1031 = vmatpush2.xpose.msra.mxu0 0.0
        %1032 = vmatprep.subr.mxu0 0.0
        %1033 = vmatpush2.xpose.msra.mxu0 0.0
        %1034 = vmatprep.subr.mxu0 0.0
        %1035 = vmatpush2.xpose.msra.mxu0 0.0
        %1036 = vmatprep.subr.mxu0 0.0
        %1037 = vmatpush2.xpose.msra.mxu0 0.0
        %1038 = vmatprep.subr.mxu0 0.0
        %1039 = vmatpush2.xpose.msra.mxu0 0.0
        %1040 = vmatprep.subr.mxu0 0.0
        %1041 = vmatpush2.xpose.msra.mxu0 0.0
        %1042 = vmatprep.subr.mxu0 0.0
        %1043 = vmatpush2.xpose.msra.mxu0 0.0
        %1044 = vmatprep.subr.mxu0 0.0
        %1045 = vmatpush2.xpose.msra.mxu0 0.0
        %1046 = vmatprep.subr.mxu0 0.0
        %1047 = vmatpush2.xpose.msra.mxu0 0.0
        %1048 = vmatprep.mubr.f32.mxu0 0.0
        %1049 = vmatmul.mubr.f32.gmra.mxu0 %v980
        %v1050 = vpop.f32.mrf.mxu0
        %v1051 = vadd.f32 0.0, %v1050
        %v1052 = vpop.f32.mrf.mxu0
        %1053 = vdwg.mxu0
        %v1054 = vmul.f32 %v1051, 0.35355338
        %v1055 = vadd.f32 %v1054, %v888
        %v1056 = vsel %vm806, %v1055, -inf
        %1057 = vmax.xlane.f32.xlu0 %v1056
        %v1058 = vpop.xlane.xlu0 %1057
        %v1059 = vsub.f32 %v1055, %v1058
        %v1060 = vmul.f32 %v1059, 1.442695
        %v1061 = vpow.pop %v1060
        %v1062 = vsel %vm806, %v1061, 0.0
        %1063 = vadd.xlane.f32.xlu0 %v1062
        %v1064 = vpop.xlane.xlu0 %1063
        %v1065 = vrcp.pop %v1064
        %v1066 = vmul.f32 %v1061, %v1065
        %1068 = vrot.lane.b32.xlu0 %v802, 120
        %v1069 = vpop.permute.xlu0 %1068
        %v1072 = vsel %vm806, %v1066, 0
        %1074 = vmatprep.subr.mxu0 0.0
        %1075 = vmatpush1.msra.mxu0 0.0
        %1076 = vmatprep.subr.mxu0 0.0
        %1077 = vmatpush1.msra.mxu0 0.0
        %1078 = vmatprep.subr.mxu0 0.0
        %1079 = vmatpush1.msra.mxu0 0.0
        %1080 = vmatprep.subr.mxu0 0.0
        %1081 = vmatpush1.msra.mxu0 0.0
        %1082 = vmatprep.subr.mxu0 0.0
        %1083 = vmatpush1.msra.mxu0 0.0
        %1084 = vmatprep.subr.mxu0 0.0
        %1085 = vmatpush1.msra.mxu0 0.0
        %1086 = vmatprep.subr.mxu0 0.0
        %1087 = vmatpush1.msra.mxu0 0.0
        %1088 = vmatprep.subr.mxu0 0.0
        %1089 = vmatpush1.msra.mxu0 0.0
        %1090 = vmatprep.subr.mxu0 0.0
        %1091 = vmatpush1.msra.mxu0 0.0
        %1092 = vmatprep.subr.mxu0 0.0
        %1093 = vmatpush1.msra.mxu0 0.0
        %1094 = vmatprep.subr.mxu0 0.0
        %1095 = vmatpush1.msra.mxu0 0.0
        %1096 = vmatprep.subr.mxu0 0.0
        %1097 = vmatpush1.msra.mxu0 0.0
        %1098 = vmatprep.subr.mxu0 0.0
        %1099 = vmatpush1.msra.mxu0 0.0
        %1100 = vmatprep.subr.mxu0 0.0
        %1101 = vmatpush1.msra.mxu0 0.0
        %1102 = vmatprep.subr.mxu0 0.0
        %1103 = vmatpush1.msra.mxu0 0.0
        %1104 = vmatprep.subr.mxu0 0.0
        %1105 = vmatpush1.msra.mxu0 %v1069
        %1106 = vmatprep.subr.mxu0 0.0
        %1107 = vmatpush2.msra.mxu0 0.0
        %1108 = vmatprep.subr.mxu0 0.0
        %1109 = vmatpush2.msra.mxu0 0.0
        %1110 = vmatprep.subr.mxu0 0.0
        %1111 = vmatpush2.msra.mxu0 0.0
        %1112 = vmatprep.subr.mxu0 0.0
        %1113 = vmatpush2.msra.mxu0 0.0
        %1114 = vmatprep.subr.mxu0 0.0
        %1115 = vmatpush2.msra.mxu0 0.0
        %1116 = vmatprep.subr.mxu0 0.0
        %1117 = vmatpush2.msra.mxu0 0.0
        %1118 = vmatprep.subr.mxu0 0.0
        %1119 = vmatpush2.msra.mxu0 0.0
        %1120 = vmatprep.subr.mxu0 0.0
        %1121 = vmatpush2.msra.mxu0 0.0
        %1122 = vmatprep.subr.mxu0 0.0
        %1123 = vmatpush2.msra.mxu0 0.0
        %1124 = vmatprep.subr.mxu0 0.0
        %1125 = vmatpush2.msra.mxu0 0.0
        %1126 = vmatprep.subr.mxu0 0.0
        %1127 = vmatpush2.msra.mxu0 0.0
        %1128 = vmatprep.subr.mxu0 0.0
        %1129 = vmatpush2.msra.mxu0 0.0
        %1130 = vmatprep.subr.mxu0 0.0
        %1131 = vmatpush2.msra.mxu0 0.0
        %1132 = vmatprep.subr.mxu0 0.0
        %1133 = vmatpush2.msra.mxu0 0.0
        %1134 = vmatprep.subr.mxu0 0.0
        %1135 = vmatpush2.msra.mxu0 0.0
        %1136 = vmatprep.subr.mxu0 0.0
        %1137 = vmatpush2.msra.mxu0 0.0
        %1138 = vmatprep.mubr.f32.mxu0 0.0
        %1139 = vmatmul.mubr.f32.gmra.mxu0 %v1072
        %v1140 = vpop.f32.mrf.mxu0
        %v1141 = vadd.f32 0.0, %v1140
        %v1142 = vpop.f32.mrf.mxu0
        %1143 = vdwg.mxu0
        %1145 = vrot.lane.b32.xlu0 %v1141, 8
        %v1146 = vpop.permute.xlu0 %1145
        %vm1148 = vcmask 130112
        %1149 = vst.msk [vmem:[#allocation2] sm:$0xff] %vm1148, %v1146
        %1150 = vrot.lane.b32.xlu0 %v616, 112
        %v1151 = vpop.permute.xlu0 %1150
        %1152 = vrot.lane.b32.xlu0 %v709, 112
        %v1153 = vpop.permute.xlu0 %1152
        %v1154 = vsel %vm806, %v1151, 0
        %v1156 = vsel %vm806, %v1153, 0
        %1158 = vmatprep.subr.mxu0 0.0
        %1159 = vmatpush1.xpose.msra.mxu0 0.0
        %1160 = vmatprep.subr.mxu0 0.0
        %1161 = vmatpush1.xpose.msra.mxu0 0.0
        %1162 = vmatprep.subr.mxu0 0.0
        %1163 = vmatpush1.xpose.msra.mxu0 0.0
        %1164 = vmatprep.subr.mxu0 0.0
        %1165 = vmatpush1.xpose.msra.mxu0 0.0
        %1166 = vmatprep.subr.mxu0 0.0
        %1167 = vmatpush1.xpose.msra.mxu0 0.0
        %1168 = vmatprep.subr.mxu0 0.0
        %1169 = vmatpush1.xpose.msra.mxu0 0.0
        %1170 = vmatprep.subr.mxu0 0.0
        %1171 = vmatpush1.xpose.msra.mxu0 0.0
        %1172 = vmatprep.subr.mxu0 0.0
        %1173 = vmatpush1.xpose.msra.mxu0 0.0
        %1174 = vmatprep.subr.mxu0 0.0
        %1175 = vmatpush1.xpose.msra.mxu0 0.0
        %1176 = vmatprep.subr.mxu0 0.0
        %1177 = vmatpush1.xpose.msra.mxu0 0.0
        %1178 = vmatprep.subr.mxu0 0.0
        %1179 = vmatpush1.xpose.msra.mxu0 0.0
        %1180 = vmatprep.subr.mxu0 0.0
        %1181 = vmatpush1.xpose.msra.mxu0 0.0
        %1182 = vmatprep.subr.mxu0 0.0
        %1183 = vmatpush1.xpose.msra.mxu0 0.0
        %1184 = vmatprep.subr.mxu0 0.0
        %1185 = vmatpush1.xpose.msra.mxu0 0.0
        %1186 = vmatprep.subr.mxu0 0.0
        %1187 = vmatpush1.xpose.msra.mxu0 0.0
        %1188 = vmatprep.subr.mxu0 0.0
        %1189 = vmatpush1.xpose.msra.mxu0 %v1156
        %1190 = vmatprep.subr.mxu0 0.0
        %1191 = vmatpush2.xpose.msra.mxu0 0.0
        %1192 = vmatprep.subr.mxu0 0.0
        %1193 = vmatpush2.xpose.msra.mxu0 0.0
        %1194 = vmatprep.subr.mxu0 0.0
        %1195 = vmatpush2.xpose.msra.mxu0 0.0
        %1196 = vmatprep.subr.mxu0 0.0
        %1197 = vmatpush2.xpose.msra.mxu0 0.0
        %1198 = vmatprep.subr.mxu0 0.0
        %1199 = vmatpush2.xpose.msra.mxu0 0.0
        %1200 = vmatprep.subr.mxu0 0.0
        %1201 = vmatpush2.xpose.msra.mxu0 0.0
        %1202 = vmatprep.subr.mxu0 0.0
        %1203 = vmatpush2.xpose.msra.mxu0 0.0
        %1204 = vmatprep.subr.mxu0 0.0
        %1205 = vmatpush2.xpose.msra.mxu0 0.0
        %1206 = vmatprep.subr.mxu0 0.0
        %1207 = vmatpush2.xpose.msra.mxu0 0.0
        %1208 = vmatprep.subr.mxu0 0.0
        %1209 = vmatpush2.xpose.msra.mxu0 0.0
        %1210 = vmatprep.subr.mxu0 0.0
        %1211 = vmatpush2.xpose.msra.mxu0 0.0
        %1212 = vmatprep.subr.mxu0 0.0
        %1213 = vmatpush2.xpose.msra.mxu0 0.0
        %1214 = vmatprep.subr.mxu0 0.0
        %1215 = vmatpush2.xpose.msra.mxu0 0.0
        %1216 = vmatprep.subr.mxu0 0.0
        %1217 = vmatpush2.xpose.msra.mxu0 0.0
        %1218 = vmatprep.subr.mxu0 0.0
        %1219 = vmatpush2.xpose.msra.mxu0 0.0
        %1220 = vmatprep.subr.mxu0 0.0
        %1221 = vmatpush2.xpose.msra.mxu0 0.0
        %1222 = vmatprep.mubr.f32.mxu0 0.0
        %1223 = vmatmul.mubr.f32.gmra.mxu0 %v1154
        %v1224 = vpop.f32.mrf.mxu0
        %v1225 = vadd.f32 0.0, %v1224
        %v1226 = vpop.f32.mrf.mxu0
        %1227 = vdwg.mxu0
        %v1228 = vmul.f32 %v1225, 0.35355338
        %v1229 = vadd.f32 %v1228, %v888
        %v1230 = vsel %vm806, %v1229, -inf
        %1231 = vmax.xlane.f32.xlu0 %v1230
        %v1232 = vpop.xlane.xlu0 %1231
        %v1233 = vsub.f32 %v1229, %v1232
        %v1234 = vmul.f32 %v1233, 1.442695
        %v1235 = vpow.pop %v1234
        %v1236 = vsel %vm806, %v1235, 0.0
        %1237 = vadd.xlane.f32.xlu0 %v1236
        %v1238 = vpop.xlane.xlu0 %1237
        %v1239 = vrcp.pop %v1238
        %v1240 = vmul.f32 %v1235, %v1239
        %1241 = vrot.lane.b32.xlu0 %v802, 112
        %v1242 = vpop.permute.xlu0 %1241
        %v1245 = vsel %vm806, %v1240, 0
        %1247 = vmatprep.subr.mxu0 0.0
        %1248 = vmatpush1.msra.mxu0 0.0
        %1249 = vmatprep.subr.mxu0 0.0
        %1250 = vmatpush1.msra.mxu0 0.0
        %1251 = vmatprep.subr.mxu0 0.0
        %1252 = vmatpush1.msra.mxu0 0.0
        %1253 = vmatprep.subr.mxu0 0.0
        %1254 = vmatpush1.msra.mxu0 0.0
        %1255 = vmatprep.subr.mxu0 0.0
        %1256 = vmatpush1.msra.mxu0 0.0
        %1257 = vmatprep.subr.mxu0 0.0
        %1258 = vmatpush1.msra.mxu0 0.0
        %1259 = vmatprep.subr.mxu0 0.0
        %1260 = vmatpush1.msra.mxu0 0.0
        %1261 = vmatprep.subr.mxu0 0.0
        %1262 = vmatpush1.msra.mxu0 0.0
        %1263 = vmatprep.subr.mxu0 0.0
        %1264 = vmatpush1.msra.mxu0 0.0
        %1265 = vmatprep.subr.mxu0 0.0
        %1266 = vmatpush1.msra.mxu0 0.0
        %1267 = vmatprep.subr.mxu0 0.0
        %1268 = vmatpush1.msra.mxu0 0.0
        %1269 = vmatprep.subr.mxu0 0.0
        %1270 = vmatpush1.msra.mxu0 0.0
        %1271 = vmatprep.subr.mxu0 0.0
        %1272 = vmatpush1.msra.mxu0 0.0
        %1273 = vmatprep.subr.mxu0 0.0
        %1274 = vmatpush1.msra.mxu0 0.0
        %1275 = vmatprep.subr.mxu0 0.0
        %1276 = vmatpush1.msra.mxu0 0.0
        %1277 = vmatprep.subr.mxu0 0.0
        %1278 = vmatpush1.msra.mxu0 %v1242
        %1279 = vmatprep.subr.mxu0 0.0
        %1280 = vmatpush2.msra.mxu0 0.0
        %1281 = vmatprep.subr.mxu0 0.0
        %1282 = vmatpush2.msra.mxu0 0.0
        %1283 = vmatprep.subr.mxu0 0.0
        %1284 = vmatpush2.msra.mxu0 0.0
        %1285 = vmatprep.subr.mxu0 0.0
        %1286 = vmatpush2.msra.mxu0 0.0
        %1287 = vmatprep.subr.mxu0 0.0
        %1288 = vmatpush2.msra.mxu0 0.0
        %1289 = vmatprep.subr.mxu0 0.0
        %1290 = vmatpush2.msra.mxu0 0.0
        %1291 = vmatprep.subr.mxu0 0.0
        %1292 = vmatpush2.msra.mxu0 0.0
        %1293 = vmatprep.subr.mxu0 0.0
        %1294 = vmatpush2.msra.mxu0 0.0
        %1295 = vmatprep.subr.mxu0 0.0
        %1296 = vmatpush2.msra.mxu0 0.0
        %1297 = vmatprep.subr.mxu0 0.0
        %1298 = vmatpush2.msra.mxu0 0.0
        %1299 = vmatprep.subr.mxu0 0.0
        %1300 = vmatpush2.msra.mxu0 0.0
        %1301 = vmatprep.subr.mxu0 0.0
        %1302 = vmatpush2.msra.mxu0 0.0
        %1303 = vmatprep.subr.mxu0 0.0
        %1304 = vmatpush2.msra.mxu0 0.0
        %1305 = vmatprep.subr.mxu0 0.0
        %1306 = vmatpush2.msra.mxu0 0.0
        %1307 = vmatprep.subr.mxu0 0.0
        %1308 = vmatpush2.msra.mxu0 0.0
        %1309 = vmatprep.subr.mxu0 0.0
        %1310 = vmatpush2.msra.mxu0 0.0
        %1311 = vmatprep.mubr.f32.mxu0 0.0
        %1312 = vmatmul.mubr.f32.gmra.mxu0 %v1245
        %v1313 = vpop.f32.mrf.mxu0
        %v1314 = vadd.f32 0.0, %v1313
        %v1315 = vpop.f32.mrf.mxu0
        %1316 = vdwg.mxu0
        %1318 = vrot.lane.b32.xlu0 %v1314, 16
        %v1319 = vpop.permute.xlu0 %1318
        %vm1321 = vcmask 195712
        %1322 = vst.msk [vmem:[#allocation2] sm:$0xff] %vm1321, %v1319
        %1323 = vrot.lane.b32.xlu0 %v616, 104
        %v1324 = vpop.permute.xlu0 %1323
        %1325 = vrot.lane.b32.xlu0 %v709, 104
        %v1326 = vpop.permute.xlu0 %1325
        %v1327 = vsel %vm806, %v1324, 0
        %v1329 = vsel %vm806, %v1326, 0
        %1331 = vmatprep.subr.mxu0 0.0
        %1332 = vmatpush1.xpose.msra.mxu0 0.0
        %1333 = vmatprep.subr.mxu0 0.0
        %1334 = vmatpush1.xpose.msra.mxu0 0.0
        %1335 = vmatprep.subr.mxu0 0.0
        %1336 = vmatpush1.xpose.msra.mxu0 0.0
        %1337 = vmatprep.subr.mxu0 0.0
        %1338 = vmatpush1.xpose.msra.mxu0 0.0
        %1339 = vmatprep.subr.mxu0 0.0
        %1340 = vmatpush1.xpose.msra.mxu0 0.0
        %1341 = vmatprep.subr.mxu0 0.0
        %1342 = vmatpush1.xpose.msra.mxu0 0.0
        %1343 = vmatprep.subr.mxu0 0.0
        %1344 = vmatpush1.xpose.msra.mxu0 0.0
        %1345 = vmatprep.subr.mxu0 0.0
        %1346 = vmatpush1.xpose.msra.mxu0 0.0
        %1347 = vmatprep.subr.mxu0 0.0
        %1348 = vmatpush1.xpose.msra.mxu0 0.0
        %1349 = vmatprep.subr.mxu0 0.0
        %1350 = vmatpush1.xpose.msra.mxu0 0.0
        %1351 = vmatprep.subr.mxu0 0.0
        %1352 = vmatpush1.xpose.msra.mxu0 0.0
        %1353 = vmatprep.subr.mxu0 0.0
        %1354 = vmatpush1.xpose.msra.mxu0 0.0
        %1355 = vmatprep.subr.mxu0 0.0
        %1356 = vmatpush1.xpose.msra.mxu0 0.0
        %1357 = vmatprep.subr.mxu0 0.0
        %1358 = vmatpush1.xpose.msra.mxu0 0.0
        %1359 = vmatprep.subr.mxu0 0.0
        %1360 = vmatpush1.xpose.msra.mxu0 0.0
        %1361 = vmatprep.subr.mxu0 0.0
        %1362 = vmatpush1.xpose.msra.mxu0 %v1329
        %1363 = vmatprep.subr.mxu0 0.0
        %1364 = vmatpush2.xpose.msra.mxu0 0.0
        %1365 = vmatprep.subr.mxu0 0.0
        %1366 = vmatpush2.xpose.msra.mxu0 0.0
        %1367 = vmatprep.subr.mxu0 0.0
        %1368 = vmatpush2.xpose.msra.mxu0 0.0
        %1369 = vmatprep.subr.mxu0 0.0
        %1370 = vmatpush2.xpose.msra.mxu0 0.0
        %1371 = vmatprep.subr.mxu0 0.0
        %1372 = vmatpush2.xpose.msra.mxu0 0.0
        %1373 = vmatprep.subr.mxu0 0.0
        %1374 = vmatpush2.xpose.msra.mxu0 0.0
        %1375 = vmatprep.subr.mxu0 0.0
        %1376 = vmatpush2.xpose.msra.mxu0 0.0
        %1377 = vmatprep.subr.mxu0 0.0
        %1378 = vmatpush2.xpose.msra.mxu0 0.0
        %1379 = vmatprep.subr.mxu0 0.0
        %1380 = vmatpush2.xpose.msra.mxu0 0.0
        %1381 = vmatprep.subr.mxu0 0.0
        %1382 = vmatpush2.xpose.msra.mxu0 0.0
        %1383 = vmatprep.subr.mxu0 0.0
        %1384 = vmatpush2.xpose.msra.mxu0 0.0
        %1385 = vmatprep.subr.mxu0 0.0
        %1386 = vmatpush2.xpose.msra.mxu0 0.0
        %1387 = vmatprep.subr.mxu0 0.0
        %1388 = vmatpush2.xpose.msra.mxu0 0.0
        %1389 = vmatprep.subr.mxu0 0.0
        %1390 = vmatpush2.xpose.msra.mxu0 0.0
        %1391 = vmatprep.subr.mxu0 0.0
        %1392 = vmatpush2.xpose.msra.mxu0 0.0
        %1393 = vmatprep.subr.mxu0 0.0
        %1394 = vmatpush2.xpose.msra.mxu0 0.0
        %1395 = vmatprep.mubr.f32.mxu0 0.0
        %1396 = vmatmul.mubr.f32.gmra.mxu0 %v1327
        %v1397 = vpop.f32.mrf.mxu0
        %v1398 = vadd.f32 0.0, %v1397
        %v1399 = vpop.f32.mrf.mxu0
        %1400 = vdwg.mxu0
        %v1401 = vmul.f32 %v1398, 0.35355338
        %v1402 = vadd.f32 %v1401, %v888
        %v1403 = vsel %vm806, %v1402, -inf
        %1404 = vmax.xlane.f32.xlu0 %v1403
        %v1405 = vpop.xlane.xlu0 %1404
        %v1406 = vsub.f32 %v1402, %v1405
        %v1407 = vmul.f32 %v1406, 1.442695
        %v1408 = vpow.pop %v1407
        %v1409 = vsel %vm806, %v1408, 0.0
        %1410 = vadd.xlane.f32.xlu0 %v1409
        %v1411 = vpop.xlane.xlu0 %1410
        %v1412 = vrcp.pop %v1411
        %v1413 = vmul.f32 %v1408, %v1412
        %1414 = vrot.lane.b32.xlu0 %v802, 104
        %v1415 = vpop.permute.xlu0 %1414
        %v1418 = vsel %vm806, %v1413, 0
        %1420 = vmatprep.subr.mxu0 0.0
        %1421 = vmatpush1.msra.mxu0 0.0
        %1422 = vmatprep.subr.mxu0 0.0
        %1423 = vmatpush1.msra.mxu0 0.0
        %1424 = vmatprep.subr.mxu0 0.0
        %1425 = vmatpush1.msra.mxu0 0.0
        %1426 = vmatprep.subr.mxu0 0.0
        %1427 = vmatpush1.msra.mxu0 0.0
        %1428 = vmatprep.subr.mxu0 0.0
        %1429 = vmatpush1.msra.mxu0 0.0
        %1430 = vmatprep.subr.mxu0 0.0
        %1431 = vmatpush1.msra.mxu0 0.0
        %1432 = vmatprep.subr.mxu0 0.0
        %1433 = vmatpush1.msra.mxu0 0.0
        %1434 = vmatprep.subr.mxu0 0.0
        %1435 = vmatpush1.msra.mxu0 0.0
        %1436 = vmatprep.subr.mxu0 0.0
        %1437 = vmatpush1.msra.mxu0 0.0
        %1438 = vmatprep.subr.mxu0 0.0
        %1439 = vmatpush1.msra.mxu0 0.0
        %1440 = vmatprep.subr.mxu0 0.0
        %1441 = vmatpush1.msra.mxu0 0.0
        %1442 = vmatprep.subr.mxu0 0.0
        %1443 = vmatpush1.msra.mxu0 0.0
        %1444 = vmatprep.subr.mxu0 0.0
        %1445 = vmatpush1.msra.mxu0 0.0
        %1446 = vmatprep.subr.mxu0 0.0
        %1447 = vmatpush1.msra.mxu0 0.0
        %1448 = vmatprep.subr.mxu0 0.0
        %1449 = vmatpush1.msra.mxu0 0.0
        %1450 = vmatprep.subr.mxu0 0.0
        %1451 = vmatpush1.msra.mxu0 %v1415
        %1452 = vmatprep.subr.mxu0 0.0
        %1453 = vmatpush2.msra.mxu0 0.0
        %1454 = vmatprep.subr.mxu0 0.0
        %1455 = vmatpush2.msra.mxu0 0.0
        %1456 = vmatprep.subr.mxu0 0.0
        %1457 = vmatpush2.msra.mxu0 0.0
        %1458 = vmatprep.subr.mxu0 0.0
        %1459 = vmatpush2.msra.mxu0 0.0
        %1460 = vmatprep.subr.mxu0 0.0
        %1461 = vmatpush2.msra.mxu0 0.0
        %1462 = vmatprep.subr.mxu0 0.0
        %1463 = vmatpush2.msra.mxu0 0.0
        %1464 = vmatprep.subr.mxu0 0.0
        %1465 = vmatpush2.msra.mxu0 0.0
        %1466 = vmatprep.subr.mxu0 0.0
        %1467 = vmatpush2.msra.mxu0 0.0
        %1468 = vmatprep.subr.mxu0 0.0
        %1469 = vmatpush2.msra.mxu0 0.0
        %1470 = vmatprep.subr.mxu0 0.0
        %1471 = vmatpush2.msra.mxu0 0.0
        %1472 = vmatprep.subr.mxu0 0.0
        %1473 = vmatpush2.msra.mxu0 0.0
        %1474 = vmatprep.subr.mxu0 0.0
        %1475 = vmatpush2.msra.mxu0 0.0
        %1476 = vmatprep.subr.mxu0 0.0
        %1477 = vmatpush2.msra.mxu0 0.0
        %1478 = vmatprep.subr.mxu0 0.0
        %1479 = vmatpush2.msra.mxu0 0.0
        %1480 = vmatprep.subr.mxu0 0.0
        %1481 = vmatpush2.msra.mxu0 0.0
        %1482 = vmatprep.subr.mxu0 0.0
        %1483 = vmatpush2.msra.mxu0 0.0
        %1484 = vmatprep.mubr.f32.mxu0 0.0
        %1485 = vmatmul.mubr.f32.gmra.mxu0 %v1418
        %v1486 = vpop.f32.mrf.mxu0
        %v1487 = vadd.f32 0.0, %v1486
        %v1488 = vpop.f32.mrf.mxu0
        %1489 = vdwg.mxu0
        %1491 = vrot.lane.b32.xlu0 %v1487, 24
        %v1492 = vpop.permute.xlu0 %1491
        %vm1494 = vcmask 261312
        %1495 = vst.msk [vmem:[#allocation2] sm:$0xff] %vm1494, %v1492
        %v1496 = vld [vmem:[#allocation2] sm:$0xff]
        %v1497 = vld [vmem:[#allocation12] sm:$0xff]
        %v1498 = vld [vmem:[#allocation12 + $0x8] sm:$0xff]
        %v1499 = vld [vmem:[#allocation12 + $0x10] sm:$0xff]
        %v1500 = vld [vmem:[#allocation12 + $0x18] sm:$0xff]
        %v1501 = vld [vmem:[%s9] sm:$0x1]
        %v1503 = vlaneseq
        %v1504 = vshrl.u32 %v1503, 7
        %v1505 = vsub.s32 0, %v1504
        %v1506 = vrot.slane %v1501, %v1505
        %v1509 = vsel %vm533, %v1496, 0
        %v1512 = vsel %vm533, %v1497, 0
        %v1515 = vsel %vm533, %v1498, 0
        %v1518 = vsel %vm533, %v1499, 0
        %v1521 = vsel %vm533, %v1500, 0
        %1523 = vmatprep.subr.mxu0 0.0
        %1524 = vmatpush1.xpose.msra.mxu0 0.0
        %1525 = vmatprep.subr.mxu0 0.0
        %1526 = vmatpush1.xpose.msra.mxu0 0.0
        %1527 = vmatprep.subr.mxu0 0.0
        %1528 = vmatpush1.xpose.msra.mxu0 0.0
        %1529 = vmatprep.subr.mxu0 0.0
        %1530 = vmatpush1.xpose.msra.mxu0 0.0
        %1531 = vmatprep.subr.mxu0 0.0
        %1532 = vmatpush1.xpose.msra.mxu0 0.0
        %1533 = vmatprep.subr.mxu0 0.0
        %1534 = vmatpush1.xpose.msra.mxu0 0.0
        %1535 = vmatprep.subr.mxu0 0.0
        %1536 = vmatpush1.xpose.msra.mxu0 0.0
        %1537 = vmatprep.subr.mxu0 0.0
        %1538 = vmatpush1.xpose.msra.mxu0 0.0
        %1539 = vmatprep.subr.mxu0 0.0
        %1540 = vmatpush1.xpose.msra.mxu0 0.0
        %1541 = vmatprep.subr.mxu0 0.0
        %1542 = vmatpush1.xpose.msra.mxu0 0.0
        %1543 = vmatprep.subr.mxu0 0.0
        %1544 = vmatpush1.xpose.msra.mxu0 0.0
        %1545 = vmatprep.subr.mxu0 0.0
        %1546 = vmatpush1.xpose.msra.mxu0 0.0
        %1547 = vmatprep.subr.mxu0 0.0
        %1548 = vmatpush1.xpose.msra.mxu0 %v1521
        %1549 = vmatprep.subr.mxu0 0.0
        %1550 = vmatpush1.xpose.msra.mxu0 %v1518
        %1551 = vmatprep.subr.mxu0 0.0
        %1552 = vmatpush1.xpose.msra.mxu0 %v1515
        %1553 = vmatprep.subr.mxu0 0.0
        %1554 = vmatpush1.xpose.msra.mxu0 %v1512
        %1555 = vmatprep.subr.mxu0 0.0
        %1556 = vmatpush2.xpose.msra.mxu0 0.0
        %1557 = vmatprep.subr.mxu0 0.0
        %1558 = vmatpush2.xpose.msra.mxu0 0.0
        %1559 = vmatprep.subr.mxu0 0.0
        %1560 = vmatpush2.xpose.msra.mxu0 0.0
        %1561 = vmatprep.subr.mxu0 0.0
        %1562 = vmatpush2.xpose.msra.mxu0 0.0
        %1563 = vmatprep.subr.mxu0 0.0
        %1564 = vmatpush2.xpose.msra.mxu0 0.0
        %1565 = vmatprep.subr.mxu0 0.0
        %1566 = vmatpush2.xpose.msra.mxu0 0.0
        %1567 = vmatprep.subr.mxu0 0.0
        %1568 = vmatpush2.xpose.msra.mxu0 0.0
        %1569 = vmatprep.subr.mxu0 0.0
        %1570 = vmatpush2.xpose.msra.mxu0 0.0
        %1571 = vmatprep.subr.mxu0 0.0
        %1572 = vmatpush2.xpose.msra.mxu0 0.0
        %1573 = vmatprep.subr.mxu0 0.0
        %1574 = vmatpush2.xpose.msra.mxu0 0.0
        %1575 = vmatprep.subr.mxu0 0.0
        %1576 = vmatpush2.xpose.msra.mxu0 0.0
        %1577 = vmatprep.subr.mxu0 0.0
        %1578 = vmatpush2.xpose.msra.mxu0 0.0
        %1579 = vmatprep.subr.mxu0 0.0
        %1580 = vmatpush2.xpose.msra.mxu0 0.0
        %1581 = vmatprep.subr.mxu0 0.0
        %1582 = vmatpush2.xpose.msra.mxu0 0.0
        %1583 = vmatprep.subr.mxu0 0.0
        %1584 = vmatpush2.xpose.msra.mxu0 0.0
        %1585 = vmatprep.subr.mxu0 0.0
        %1586 = vmatpush2.xpose.msra.mxu0 0.0
        %1587 = vmatprep.mubr.f32.mxu0 0.0
        %1588 = vmatmul.mubr.f32.gmra.mxu0 %v1509
        %v1589 = vpop.f32.mrf.mxu0
        %v1590 = vadd.f32 %v1506, %v1589
        %v1591 = vpop.f32.mrf.mxu0
        %1592 = vdwg.mxu0
        %v1593 = vadd.f32 %v1590, %v521
        %v1594 = vsel %vm533, %v1593, 0.0
        %1595 = vadd.xlane.f32.xlu0 %v1594
        %v1596 = vpop.xlane.xlu0 %1595
        %v1597 = vrcp.pop 32.0
        %v1598 = vmul.f32 %v1596, %v1597
        %v1599 = vsub.f32 %v1593, %v1598
        %v1600 = vmul.f32 %v1599, %v1599
        %v1601 = vsel %vm533, %v1600, 0.0
        %1602 = vadd.xlane.f32.xlu0 %v1601
        %v1603 = vpop.xlane.xlu0 %1602
        %v1604 = vmul.f32 %v1603, %v1597
        %v1605 = vadd.f32 %v1604, 1e-12
        %v1606 = vrsqrt.pop %v1605
        %v1607 = vmul.f32 %v1599, %v1606
        %v1608 = vld [vmem:[%s10] sm:$0x1]
        %v1610 = vlaneseq
        %v1611 = vshrl.u32 %v1610, 7
        %v1612 = vsub.s32 0, %v1611
        %v1613 = vrot.slane %v1608, %v1612
        %v1615 = vmul.f32 %v1607, %v1613
        %v1616 = vld [vmem:[%s11] sm:$0x1]
        %v1618 = vlaneseq
        %v1619 = vshrl.u32 %v1618, 7
        %v1620 = vsub.s32 0, %v1619
        %v1621 = vrot.slane %v1616, %v1620
        %v1623 = vadd.f32 %v1615, %v1621
        %1624 = vst.msk [vmem:[%s520] sm:$0xff] %vm533, %v1623
        %s1625 = sand.u32 %s304, 1
        %s1626 = scalar_lea.sflag [#allocation5], %s1625
        %s1627 = sand.u32 %s304, 1
        %s1628 = smul.addr %s1627, 8
        %s1629 = scalar_lea.vmem [#allocation14], %s1628
        // Predicated region
        $region93: #{tpu_custom_call.1} parent=67 // pred_check
          %p1630 = pneg %p314
        $region94: #{tpu_custom_call.1} parent=67 // pred_check_branch
          %1632 = sbr.rel (%p1630) target = $region96
        $region95: #{tpu_custom_call.1} parent=67 // pred_region
          %s1634 = ssub.s32 128, 128
          %1635 = vsyncadd %s1626, %s1634
          %s1636 = smul.addr %s34, 128
          %s1637 = scalar_lea.hbm %s12, %s1636
          %s1639 = sshll.u32 %s1629, 4
          %s1640 = int_to_ptr.vmem [resolvable:$true] %s1639
          %1642 = dma.vmem_to_hbm [thread:$0]  %s1640, 128, %s1637, %s1626
        $region96: #{tpu_custom_call.1} parent=67 // pred_fallthru
          _
      $region68: #{tpu_custom_call.1} parent=5 // pred_fallthru
        _
      %p1643 = scmp.le.s32.totalorder 2, %s29
      // Predicated region
      $region97: #{tpu_custom_call.1} parent=5 // pred_check
        %p1644 = pneg %p1643
      $region98: #{tpu_custom_call.1} parent=5 // pred_check_branch
        %1646 = sbr.rel (%p1644) target = $region100
      $region99: #{tpu_custom_call.1} parent=5 // pred_region
        %s1647 = ssub.s32 %s29, 2
        // Predicated region
        $region101: #{tpu_custom_call.1} parent=99 // pred_check
          %p1648 = pneg %p320
        $region102: #{tpu_custom_call.1} parent=99 // pred_check_branch
          %1650 = sbr.rel (%p1648) target = $region104
        $region103: #{tpu_custom_call.1} parent=99 // pred_region
          %s1651 = sand.u32 %s305, 1
          %s1652 = scalar_lea.sflag [#allocation5], %s1651
          %s1653 = sand.u32 %s305, 1
          %s1654 = smul.addr %s1653, 8
          %s1655 = scalar_lea.vmem [#allocation14], %s1654
          %1656 = dma.done %s1652, 128
        $region104: #{tpu_custom_call.1} parent=99 // pred_fallthru
          _
      $region100: #{tpu_custom_call.1} parent=5 // pred_fallthru
        _
    $region6: #{tpu_custom_call.1} parent=1 // loop_footer
      %s33 = sadd.s32 1, %s29
    $region7: #{tpu_custom_call.1} parent=1 // loop_footer_branch
      %28 = sbr.rel target = $region3
    $region8: #{tpu_custom_call.1} parent=1 // loop_exit
      _
    %1657 = vsyncpa [#allocation4], 1
    %s1658 = scalar_lea.sflag [#allocation4], 1
    %1659 = vsyncpa %s1658, 1
    %1660 = vsyncpa [#allocation7], 1
    %s1661 = scalar_lea.sflag [#allocation7], 1
    %1662 = vsyncpa %s1661, 1
    %1663 = vsyncpa [#allocation10], 1
    %1664 = vsyncpa [#allocation13], 1
    %1665 = vsyncpa [#allocation5], 1
    %s1666 = scalar_lea.sflag [#allocation5], 1
    %1667 = vsyncpa %s1666, 1

</llo_original>
